<compile_context>
chip_gen: v6e
topology: v6e:2x2x1
jax: 0.10.0
libtpu: 0.0.40
codegen_flags: <defaults>
</compile_context>

<pallas_src>
import functools

import jax
import jax.numpy as jnp
from jax.experimental import pallas as pl
from jax.experimental.pallas import tpu as pltpu


# -----------------------------------------------------------------------------
# Fused Pallas kernel (all layers + time loop + FC epilogue)
# -----------------------------------------------------------------------------
def make_fused_lstm_kernel(num_layers, batch_tile, seq_len, input_dim,
                           hidden_dim, output_dim):
    L, TB, S, D, H, O = (num_layers, batch_tile, seq_len, input_dim,
                         hidden_dim, output_dim)
    H4 = 4 * H
    in_dims = [D] + [H] * (L - 1)
    # (TB, S, X) <-> (TB*S, X) value reshapes are layout-preserving iff
    # S % 8 == 0 (f32 sublane tile).  Otherwise fall back to per-batch-row
    # matmuls (still hoisted out of the serial time loop).
    flatten_ok = (S % 8 == 0)

    def kernel(*refs):
        x_ref = refs[0]                                   # (TB, S, D) f32, batch_first
        w_ih_refs = [refs[1 + 3 * l] for l in range(L)]   # (in_d, 4H) bf16
        w_hh_refs = [refs[2 + 3 * l] for l in range(L)]   # (H, 4H)   bf16
        b_refs = [refs[3 + 3 * l] for l in range(L)]      # (1, 4H)   f32 (b_ih + b_hh)
        fc_w_ref = refs[1 + 3 * L]                        # (H, O)    bf16
        fc_b_ref = refs[2 + 3 * L]                        # (1, O)    f32
        out_ref = refs[3 + 3 * L]                         # (TB, S, O) f32
        act_scr, gx_scr = refs[4 + 3 * L:]                # (TB,S,H) f32, (TB,S,4H) f32

        for l in range(L):                                # static layer loop
            in_d = in_dims[l]
            # Loop-invariant loads hoisted out of the time loop.
            w_ih = w_ih_refs[l][...]
            w_hh = w_hh_refs[l][...]
            bias = b_refs[l][...]

            # ---- Hoisted input-side projection: one big MXU dot (M = TB*S),
            #      bias folded in.  gx[b, t, :] = x_t @ W_ih^T + (b_ih + b_hh)
            if flatten_ok:
                if l == 0:
                    inp_flat = x_ref[...].reshape(TB * S, in_d)
                else:
                    inp_flat = act_scr[...].reshape(TB * S, in_d)
                gx = jnp.dot(inp_flat.astype(w_ih.dtype), w_ih,
                             preferred_element_type=jnp.float32) + bias
                gx_scr[...] = gx.reshape(TB, S, H4)
            else:
                for b in range(TB):
                    inp_b = x_ref[b] if l == 0 else act_scr[b]     # (S, in_d)
                    gx_scr[b] = jnp.dot(inp_b.astype(w_ih.dtype), w_ih,
                                        preferred_element_type=jnp.float32) + bias

            # ---- Serial recurrence: only the small h-part dot + gate math.
            #      h/c are loop-carried values (no VMEM round trip).
            h = jnp.zeros((TB, H), jnp.float32)
            c = jnp.zeros((TB, H), jnp.float32)
            for t in range(S):            # S small & static -> full unroll
                gates = gx_scr[:, t, :] + jnp.dot(
                    h.astype(w_hh.dtype), w_hh,
                    preferred_element_type=jnp.float32)            # (TB, 4H) f32
                # Packed gate order [i, f, o, g]: one sigmoid + one tanh.
                sig = jax.nn.sigmoid(gates[:, 0:3 * H])
                i_g = sig[:, 0 * H:1 * H]
                f_g = sig[:, 1 * H:2 * H]
                o_g = sig[:, 2 * H:3 * H]
                g_g = jnp.tanh(gates[:, 3 * H:4 * H])
                c = f_g * c + i_g * g_g
                h = o_g * jnp.tanh(c)
                act_scr[:, t, :] = h      # feeds next layer / FC epilogue

        # ---- Batched FC + sigmoid epilogue: one lane-dense matmul.
        fc_w = fc_w_ref[...]
        fc_b = fc_b_ref[...]
        if flatten_ok:
            act_flat = act_scr[...].reshape(TB * S, H)
            y = jax.nn.sigmoid(
                jnp.dot(act_flat.astype(fc_w.dtype), fc_w,
                        preferred_element_type=jnp.float32) + fc_b)
            out_ref[...] = y.reshape(TB, S, O)
        else:
            for b in range(TB):
                out_ref[b] = jax.nn.sigmoid(
                    jnp.dot(act_scr[b].astype(fc_w.dtype), fc_w,
                            preferred_element_type=jnp.float32) + fc_b)

    return kernel


# -----------------------------------------------------------------------------
# Wrapper
# -----------------------------------------------------------------------------
def fused_lstm_forward(x, layer_params, fc_w_t, fc_b, *, batch_tile=None):
    """x: (B, S, input_dim) batch_first -> (B, S, output_dim)."""
    B, S, D = x.shape
    L = len(layer_params)
    H = layer_params[0][1].shape[0]        # w_hh_t: (H, 4H)
    H4 = layer_params[0][1].shape[1]
    O = fc_w_t.shape[1]
    if batch_tile is None:
        batch_tile = B                     # v5e/v6e: biggest tile; see v7x TODO above
    assert B % batch_tile == 0, (B, batch_tile)
    TB = batch_tile

    kernel = make_fused_lstm_kernel(L, TB, S, D, H, O)

    in_specs = [pl.BlockSpec((TB, S, D), lambda i: (i, 0, 0))]
    flat_params = []
    for (w_ih_t, w_hh_t, bias) in layer_params:
        in_specs.append(pl.BlockSpec(w_ih_t.shape, lambda i: (0, 0)))   # resident
        in_specs.append(pl.BlockSpec(w_hh_t.shape, lambda i: (0, 0)))
        in_specs.append(pl.BlockSpec(bias.shape, lambda i: (0, 0)))
        flat_params += [w_ih_t, w_hh_t, bias]
    in_specs.append(pl.BlockSpec(fc_w_t.shape, lambda i: (0, 0)))
    in_specs.append(pl.BlockSpec(fc_b.shape, lambda i: (0, 0)))

    # VMEM budget from the actual resident footprint (2x for double buffering
    # of the pipelined blocks + generous headroom), clamped to a safe range.
    def nbytes(a):
        return int(a.size) * a.dtype.itemsize

    resident = 2 * (TB * S * D * 4 + TB * S * O * 4)
    resident += 2 * (sum(nbytes(a) for a in flat_params)
                     + nbytes(fc_w_t) + nbytes(fc_b))
    resident += TB * S * H * 4 + TB * S * H4 * 4          # scratch buffers
    vmem_limit = int(min(48 * 1024 * 1024,
                         max(16 * 1024 * 1024, 2 * resident)))

    return pl.pallas_call(
        kernel,
        out_shape=jax.ShapeDtypeStruct((B, S, O), jnp.float32),
        grid=(B // TB,),                    # batch tiles only; time is in-kernel
        in_specs=in_specs,
        out_specs=pl.BlockSpec((TB, S, O), lambda i: (i, 0, 0)),
        scratch_shapes=[
            pltpu.VMEM((TB, S, H), jnp.float32),    # inter-layer / FC activations
            pltpu.VMEM((TB, S, H4), jnp.float32),   # hoisted x-part gate pre-acts
        ],
        compiler_params=pltpu.CompilerParams(
            dimension_semantics=("parallel",),      # independent batch tiles
            vmem_limit_bytes=vmem_limit,
        ),
    )(x, *flat_params, fc_w_t, fc_b)


@functools.partial(jax.jit, static_argnames=("batch_tile",))
def lstm_model_forward(x, layer_params, fc_w_t, fc_b, batch_tile=None):
    return fused_lstm_forward(x, layer_params, fc_w_t, fc_b, batch_tile=batch_tile)


# -----------------------------------------------------------------------------
# Parameter init (PyTorch-style U(-1/sqrt(H), 1/sqrt(H)), PyTorch layouts)
# -----------------------------------------------------------------------------
def init_params(key, input_dim, hidden_dim, num_layers, output_dim):
    k = float(hidden_dim) ** -0.5
    raw_layers = []
    for layer in range(num_layers):
        in_d = input_dim if layer == 0 else hidden_dim
        key, k1, k2, k3, k4 = jax.random.split(key, 5)
        w_ih = jax.random.uniform(k1, (4 * hidden_dim, in_d), jnp.float32, -k, k)
        w_hh = jax.random.uniform(k2, (4 * hidden_dim, hidden_dim), jnp.float32, -k, k)
        b_ih = jax.random.uniform(k3, (4 * hidden_dim,), jnp.float32, -k, k)
        b_hh = jax.random.uniform(k4, (4 * hidden_dim,), jnp.float32, -k, k)
        raw_layers.append((w_ih, w_hh, b_ih, b_hh))
    key, k5, k6 = jax.random.split(key, 3)
    fc_w = jax.random.uniform(k5, (output_dim, hidden_dim), jnp.float32, -k, k)
    fc_b = jax.random.uniform(k6, (output_dim,), jnp.float32, -k, k)
    return raw_layers, fc_w, fc_b


def pack_params(raw_layers, fc_w, fc_b, hidden_dim, weight_dtype=jnp.bfloat16):
    """Repack PyTorch-layout params for the kernel: transpose, reorder gate
    blocks [i,f,g,o] -> [i,f,o,g], fold biases, cast weights."""
    H = hidden_dim

    def reorder(m):   # reorder along the leading 4H axis
        return jnp.concatenate([m[0:H], m[H:2 * H], m[3 * H:4 * H], m[2 * H:3 * H]],
                               axis=0)

    layer_params = []
    for (w_ih, w_hh, b_ih, b_hh) in raw_layers:
        w_ih_t = reorder(w_ih).T.astype(weight_dtype)          # (in_d, 4H)
        w_hh_t = reorder(w_hh).T.astype(weight_dtype)          # (H, 4H)
        bias = reorder(b_ih + b_hh).reshape(1, 4 * H).astype(jnp.float32)
        layer_params.append((w_ih_t, w_hh_t, bias))
    fc_w_t = fc_w.T.astype(weight_dtype)                       # (H, O)
    fc_b_row = fc_b.reshape(1, -1).astype(jnp.float32)
    return tuple(layer_params), fc_w_t, fc_b_row


# -----------------------------------------------------------------------------
# Pure-JAX reference: standard PyTorch LSTM math (same weight-dtype casts)
# -----------------------------------------------------------------------------
def reference_forward(x, raw_layers, fc_w, fc_b, weight_dtype=jnp.bfloat16):
    B, S, _ = x.shape
    xt = jnp.transpose(x, (1, 0, 2))  # (S, B, D)
    for (w_ih, w_hh, b_ih, b_hh) in raw_layers:
        H = w_hh.shape[1]
        w_ih_t = w_ih.T.astype(weight_dtype)
        w_hh_t = w_hh.T.astype(weight_dtype)
        b = (b_ih + b_hh).reshape(1, -1)

        def step(carry, x_t):
            h, c = carry
            gates = (jnp.dot(x_t.astype(weight_dtype), w_ih_t,
                             preferred_element_type=jnp.float32) + b
                     + jnp.dot(h.astype(weight_dtype), w_hh_t,
                               preferred_element_type=jnp.float32))
            i = jax.nn.sigmoid(gates[:, 0 * H:1 * H])
            f = jax.nn.sigmoid(gates[:, 1 * H:2 * H])
            g = jnp.tanh(gates[:, 2 * H:3 * H])
            o = jax.nn.sigmoid(gates[:, 3 * H:4 * H])
            c_new = f * c + i * g
            h_new = o * jnp.tanh(c_new)
            return (h_new, c_new), h_new

        h0 = jnp.zeros((B, H), jnp.float32)
        c0 = jnp.zeros((B, H), jnp.float32)
        _, xt = jax.lax.scan(step, (h0, c0), xt)
    h_all = jnp.transpose(xt, (1, 0, 2))  # (B, S, H)
    logits = jnp.dot(h_all.astype(weight_dtype), fc_w.T.astype(weight_dtype),
                     preferred_element_type=jnp.float32) + fc_b.reshape(1, -1)
    return jax.nn.sigmoid(logits)


# -----------------------------------------------------------------------------
if __name__ == "__main__":
    batch, seq, input_dim = 2, 8, 16
    hidden_dim, num_layers, output_dim = 32, 2, 4

    key = jax.random.PRNGKey(0)
    key, kx, kp = jax.random.split(key, 3)
    x = jax.random.normal(kx, (batch, seq, input_dim), jnp.float32)

    raw_layers, fc_w, fc_b = init_params(
        kp, input_dim, hidden_dim, num_layers, output_dim)
    layer_params, fc_w_t, fc_b_row = pack_params(raw_layers, fc_w, fc_b, hidden_dim)

    out = lstm_model_forward(x, layer_params, fc_w_t, fc_b_row)
    out = jax.block_until_ready(out)
    assert out.shape == (batch, seq, output_dim), out.shape

    ref = reference_forward(x, raw_layers, fc_w, fc_b)
    max_err = float(jnp.max(jnp.abs(out - ref)))
    assert max_err < 1e-4, max_err

    print("KERNEL_OK")
</pallas_src>

<mosaic_0001>
module attributes {stable_mosaic.version = 11 : i64} {
  func.func @kernel(%arg0: i32, %arg1: memref<2x8x16xf32, #tpu.memory_space<vmem>>, %arg2: memref<16x128xbf16, #tpu.memory_space<vmem>>, %arg3: memref<32x128xbf16, #tpu.memory_space<vmem>>, %arg4: memref<1x128xf32, #tpu.memory_space<vmem>>, %arg5: memref<32x128xbf16, #tpu.memory_space<vmem>>, %arg6: memref<32x128xbf16, #tpu.memory_space<vmem>>, %arg7: memref<1x128xf32, #tpu.memory_space<vmem>>, %arg8: memref<32x4xbf16, #tpu.memory_space<vmem>>, %arg9: memref<1x4xf32, #tpu.memory_space<vmem>>, %arg10: memref<2x8x4xf32, #tpu.memory_space<vmem>>, %arg11: memref<2x8x32xf32, #tpu.memory_space<vmem>>, %arg12: memref<2x8x128xf32, #tpu.memory_space<vmem>>) attributes {dimension_semantics = [#tpu.dimension_semantics<parallel>], iteration_bounds = array<i64: 1>, scalar_prefetch = 0 : i64, scratch_operands = 2 : i64, tpu.core_type = #tpu.core_type<tc>, window_params = [{transform_indices = @transform_0, window_bounds = array<i64: 2, 8, 16>}, {pipeline_mode = #tpu.pipeline_mode<synchronous>, transform_indices = @transform_1, window_bounds = array<i64: 16, 128>}, {pipeline_mode = #tpu.pipeline_mode<synchronous>, transform_indices = @transform_2, window_bounds = array<i64: 32, 128>}, {pipeline_mode = #tpu.pipeline_mode<synchronous>, transform_indices = @transform_3, window_bounds = array<i64: 1, 128>}, {pipeline_mode = #tpu.pipeline_mode<synchronous>, transform_indices = @transform_4, window_bounds = array<i64: 32, 128>}, {pipeline_mode = #tpu.pipeline_mode<synchronous>, transform_indices = @transform_5, window_bounds = array<i64: 32, 128>}, {pipeline_mode = #tpu.pipeline_mode<synchronous>, transform_indices = @transform_6, window_bounds = array<i64: 1, 128>}, {pipeline_mode = #tpu.pipeline_mode<synchronous>, transform_indices = @transform_7, window_bounds = array<i64: 32, 4>}, {pipeline_mode = #tpu.pipeline_mode<synchronous>, transform_indices = @transform_8, window_bounds = array<i64: 1, 4>}, {transform_indices = @transform_9, window_bounds = array<i64: 2, 8, 4>}]} {
    %c0 = arith.constant 0 : index
    %c0_0 = arith.constant 0 : index
    %0 = vector.load %arg2[%c0, %c0_0] : memref<16x128xbf16, #tpu.memory_space<vmem>>, vector<16x128xbf16>
    %c0_1 = arith.constant 0 : index
    %c0_2 = arith.constant 0 : index
    %1 = vector.load %arg3[%c0_1, %c0_2] : memref<32x128xbf16, #tpu.memory_space<vmem>>, vector<32x128xbf16>
    %c0_3 = arith.constant 0 : index
    %c0_4 = arith.constant 0 : index
    %2 = vector.load %arg4[%c0_3, %c0_4] : memref<1x128xf32, #tpu.memory_space<vmem>>, vector<1x128xf32>
    %c0_5 = arith.constant 0 : index
    %c0_6 = arith.constant 0 : index
    %c0_7 = arith.constant 0 : index
    %3 = vector.load %arg1[%c0_5, %c0_6, %c0_7] : memref<2x8x16xf32, #tpu.memory_space<vmem>>, vector<2x8x16xf32>
    %4 = vector.shape_cast %3 : vector<2x8x16xf32> to vector<16x16xf32>
    %5 = arith.truncf %4 : vector<16x16xf32> to vector<16x16xbf16>
    %cst = arith.constant dense<0.000000e+00> : vector<16x128xf32>
    %6 = tpu.matmul %5, %0, %cst {dimension_numbers = #tpu.dot_dimension_numbers<[1], [0], [0], [1], [0, 0, 1, 1], [], []>} : vector<16x16xbf16>, vector<16x128xbf16>, vector<16x128xf32> -> vector<16x128xf32>
    %7 = vector.broadcast %2 : vector<1x128xf32> to vector<16x128xf32>
    %8 = arith.addf %6, %7 : vector<16x128xf32>
    %9 = vector.shape_cast %8 : vector<16x128xf32> to vector<2x8x128xf32>
    %c0_8 = arith.constant 0 : index
    %c0_9 = arith.constant 0 : index
    %c0_10 = arith.constant 0 : index
    %10 = vector.load %arg12[%c0_8, %c0_9, %c0_10] : memref<2x8x128xf32, #tpu.memory_space<vmem>>, vector<2x8x128xf32>
    tpu.vector_store %arg12[%c0_8, %c0_9, %c0_10], %9 {strides = array<i32>} : memref<2x8x128xf32, #tpu.memory_space<vmem>>, vector<2x8x128xf32>,
    %cst_11 = arith.constant 0.000000e+00 : f32
    %11 = vector.broadcast %cst_11 : f32 to vector<2x32xf32>
    %cst_12 = arith.constant 0.000000e+00 : f32
    %12 = vector.broadcast %cst_12 : f32 to vector<2x32xf32>
    %c0_13 = arith.constant 0 : index
    %c0_14 = arith.constant 0 : index
    %c0_15 = arith.constant 0 : index
    %13 = vector.load %arg12[%c0_13, %c0_14, %c0_15] : memref<2x8x128xf32, #tpu.memory_space<vmem>>, vector<2x1x128xf32>
    %14 = vector.shape_cast %13 : vector<2x1x128xf32> to vector<2x128xf32>
    %15 = arith.truncf %11 : vector<2x32xf32> to vector<2x32xbf16>
    %cst_16 = arith.constant dense<0.000000e+00> : vector<2x128xf32>
    %16 = tpu.matmul %15, %1, %cst_16 {dimension_numbers = #tpu.dot_dimension_numbers<[1], [0], [0], [1], [0, 0, 1, 1], [], []>} : vector<2x32xbf16>, vector<32x128xbf16>, vector<2x128xf32> -> vector<2x128xf32>
    %17 = arith.addf %14, %16 : vector<2x128xf32>
    %18 = vector.extract_strided_slice %17 {offsets = [0, 0], sizes = [2, 96], strides = [1, 1]} : vector<2x128xf32> to vector<2x96xf32>
    %19 = arith.negf %18 : vector<2x96xf32>
    %20 = math.exp %19 : vector<2x96xf32>
    %cst_17 = arith.constant 1.000000e+00 : f32
    %21 = vector.broadcast %cst_17 : f32 to vector<2x96xf32>
    %22 = arith.addf %21, %20 : vector<2x96xf32>
    %23 = arith.divf %21, %22 : vector<2x96xf32>
    %24 = vector.extract_strided_slice %23 {offsets = [0, 0], sizes = [2, 32], strides = [1, 1]} : vector<2x96xf32> to vector<2x32xf32>
    %25 = vector.extract_strided_slice %23 {offsets = [0, 32], sizes = [2, 32], strides = [1, 1]} : vector<2x96xf32> to vector<2x32xf32>
    %26 = vector.extract_strided_slice %23 {offsets = [0, 64], sizes = [2, 32], strides = [1, 1]} : vector<2x96xf32> to vector<2x32xf32>
    %27 = vector.extract_strided_slice %17 {offsets = [0, 96], sizes = [2, 32], strides = [1, 1]} : vector<2x128xf32> to vector<2x32xf32>
    %28 = math.tanh %27 : vector<2x32xf32>
    %29 = arith.mulf %25, %12 : vector<2x32xf32>
    %30 = arith.mulf %24, %28 : vector<2x32xf32>
    %31 = arith.addf %29, %30 : vector<2x32xf32>
    %32 = math.tanh %31 : vector<2x32xf32>
    %33 = arith.mulf %26, %32 : vector<2x32xf32>
    %c0_18 = arith.constant 0 : index
    %c0_19 = arith.constant 0 : index
    %c0_20 = arith.constant 0 : index
    %34 = vector.load %arg11[%c0_18, %c0_19, %c0_20] : memref<2x8x32xf32, #tpu.memory_space<vmem>>, vector<2x1x32xf32>
    %35 = vector.shape_cast %34 : vector<2x1x32xf32> to vector<2x32xf32>
    %36 = vector.shape_cast %33 : vector<2x32xf32> to vector<2x1x32xf32>
    tpu.vector_store %arg11[%c0_18, %c0_19, %c0_20], %36 {strides = array<i32>} : memref<2x8x32xf32, #tpu.memory_space<vmem>>, vector<2x1x32xf32>,
    %c0_21 = arith.constant 0 : index
    %c1 = arith.constant 1 : index
    %c0_22 = arith.constant 0 : index
    %37 = vector.load %arg12[%c0_21, %c1, %c0_22] : memref<2x8x128xf32, #tpu.memory_space<vmem>>, vector<2x1x128xf32>
    %38 = vector.shape_cast %37 : vector<2x1x128xf32> to vector<2x128xf32>
    %39 = arith.truncf %33 : vector<2x32xf32> to vector<2x32xbf16>
    %cst_23 = arith.constant dense<0.000000e+00> : vector<2x128xf32>
    %40 = tpu.matmul %39, %1, %cst_23 {dimension_numbers = #tpu.dot_dimension_numbers<[1], [0], [0], [1], [0, 0, 1, 1], [], []>} : vector<2x32xbf16>, vector<32x128xbf16>, vector<2x128xf32> -> vector<2x128xf32>
    %41 = arith.addf %38, %40 : vector<2x128xf32>
    %42 = vector.extract_strided_slice %41 {offsets = [0, 0], sizes = [2, 96], strides = [1, 1]} : vector<2x128xf32> to vector<2x96xf32>
    %43 = arith.negf %42 : vector<2x96xf32>
    %44 = math.exp %43 : vector<2x96xf32>
    %cst_24 = arith.constant 1.000000e+00 : f32
    %45 = vector.broadcast %cst_24 : f32 to vector<2x96xf32>
    %46 = arith.addf %45, %44 : vector<2x96xf32>
    %47 = arith.divf %45, %46 : vector<2x96xf32>
    %48 = vector.extract_strided_slice %47 {offsets = [0, 0], sizes = [2, 32], strides = [1, 1]} : vector<2x96xf32> to vector<2x32xf32>
    %49 = vector.extract_strided_slice %47 {offsets = [0, 32], sizes = [2, 32], strides = [1, 1]} : vector<2x96xf32> to vector<2x32xf32>
    %50 = vector.extract_strided_slice %47 {offsets = [0, 64], sizes = [2, 32], strides = [1, 1]} : vector<2x96xf32> to vector<2x32xf32>
    %51 = vector.extract_strided_slice %41 {offsets = [0, 96], sizes = [2, 32], strides = [1, 1]} : vector<2x128xf32> to vector<2x32xf32>
    %52 = math.tanh %51 : vector<2x32xf32>
    %53 = arith.mulf %49, %31 : vector<2x32xf32>
    %54 = arith.mulf %48, %52 : vector<2x32xf32>
    %55 = arith.addf %53, %54 : vector<2x32xf32>
    %56 = math.tanh %55 : vector<2x32xf32>
    %57 = arith.mulf %50, %56 : vector<2x32xf32>
    %c0_25 = arith.constant 0 : index
    %c1_26 = arith.constant 1 : index
    %c0_27 = arith.constant 0 : index
    %58 = vector.load %arg11[%c0_25, %c1_26, %c0_27] : memref<2x8x32xf32, #tpu.memory_space<vmem>>, vector<2x1x32xf32>
    %59 = vector.shape_cast %58 : vector<2x1x32xf32> to vector<2x32xf32>
    %60 = vector.shape_cast %57 : vector<2x32xf32> to vector<2x1x32xf32>
    tpu.vector_store %arg11[%c0_25, %c1_26, %c0_27], %60 {strides = array<i32>} : memref<2x8x32xf32, #tpu.memory_space<vmem>>, vector<2x1x32xf32>,
    %c0_28 = arith.constant 0 : index
    %c2 = arith.constant 2 : index
    %c0_29 = arith.constant 0 : index
    %61 = vector.load %arg12[%c0_28, %c2, %c0_29] : memref<2x8x128xf32, #tpu.memory_space<vmem>>, vector<2x1x128xf32>
    %62 = vector.shape_cast %61 : vector<2x1x128xf32> to vector<2x128xf32>
    %63 = arith.truncf %57 : vector<2x32xf32> to vector<2x32xbf16>
    %cst_30 = arith.constant dense<0.000000e+00> : vector<2x128xf32>
    %64 = tpu.matmul %63, %1, %cst_30 {dimension_numbers = #tpu.dot_dimension_numbers<[1], [0], [0], [1], [0, 0, 1, 1], [], []>} : vector<2x32xbf16>, vector<32x128xbf16>, vector<2x128xf32> -> vector<2x128xf32>
    %65 = arith.addf %62, %64 : vector<2x128xf32>
    %66 = vector.extract_strided_slice %65 {offsets = [0, 0], sizes = [2, 96], strides = [1, 1]} : vector<2x128xf32> to vector<2x96xf32>
    %67 = arith.negf %66 : vector<2x96xf32>
    %68 = math.exp %67 : vector<2x96xf32>
    %cst_31 = arith.constant 1.000000e+00 : f32
    %69 = vector.broadcast %cst_31 : f32 to vector<2x96xf32>
    %70 = arith.addf %69, %68 : vector<2x96xf32>
    %71 = arith.divf %69, %70 : vector<2x96xf32>
    %72 = vector.extract_strided_slice %71 {offsets = [0, 0], sizes = [2, 32], strides = [1, 1]} : vector<2x96xf32> to vector<2x32xf32>
    %73 = vector.extract_strided_slice %71 {offsets = [0, 32], sizes = [2, 32], strides = [1, 1]} : vector<2x96xf32> to vector<2x32xf32>
    %74 = vector.extract_strided_slice %71 {offsets = [0, 64], sizes = [2, 32], strides = [1, 1]} : vector<2x96xf32> to vector<2x32xf32>
    %75 = vector.extract_strided_slice %65 {offsets = [0, 96], sizes = [2, 32], strides = [1, 1]} : vector<2x128xf32> to vector<2x32xf32>
    %76 = math.tanh %75 : vector<2x32xf32>
    %77 = arith.mulf %73, %55 : vector<2x32xf32>
    %78 = arith.mulf %72, %76 : vector<2x32xf32>
    %79 = arith.addf %77, %78 : vector<2x32xf32>
    %80 = math.tanh %79 : vector<2x32xf32>
    %81 = arith.mulf %74, %80 : vector<2x32xf32>
    %c0_32 = arith.constant 0 : index
    %c2_33 = arith.constant 2 : index
    %c0_34 = arith.constant 0 : index
    %82 = vector.load %arg11[%c0_32, %c2_33, %c0_34] : memref<2x8x32xf32, #tpu.memory_space<vmem>>, vector<2x1x32xf32>
    %83 = vector.shape_cast %82 : vector<2x1x32xf32> to vector<2x32xf32>
    %84 = vector.shape_cast %81 : vector<2x32xf32> to vector<2x1x32xf32>
    tpu.vector_store %arg11[%c0_32, %c2_33, %c0_34], %84 {strides = array<i32>} : memref<2x8x32xf32, #tpu.memory_space<vmem>>, vector<2x1x32xf32>,
    %c0_35 = arith.constant 0 : index
    %c3 = arith.constant 3 : index
    %c0_36 = arith.constant 0 : index
    %85 = vector.load %arg12[%c0_35, %c3, %c0_36] : memref<2x8x128xf32, #tpu.memory_space<vmem>>, vector<2x1x128xf32>
    %86 = vector.shape_cast %85 : vector<2x1x128xf32> to vector<2x128xf32>
    %87 = arith.truncf %81 : vector<2x32xf32> to vector<2x32xbf16>
    %cst_37 = arith.constant dense<0.000000e+00> : vector<2x128xf32>
    %88 = tpu.matmul %87, %1, %cst_37 {dimension_numbers = #tpu.dot_dimension_numbers<[1], [0], [0], [1], [0, 0, 1, 1], [], []>} : vector<2x32xbf16>, vector<32x128xbf16>, vector<2x128xf32> -> vector<2x128xf32>
    %89 = arith.addf %86, %88 : vector<2x128xf32>
    %90 = vector.extract_strided_slice %89 {offsets = [0, 0], sizes = [2, 96], strides = [1, 1]} : vector<2x128xf32> to vector<2x96xf32>
    %91 = arith.negf %90 : vector<2x96xf32>
    %92 = math.exp %91 : vector<2x96xf32>
    %cst_38 = arith.constant 1.000000e+00 : f32
    %93 = vector.broadcast %cst_38 : f32 to vector<2x96xf32>
    %94 = arith.addf %93, %92 : vector<2x96xf32>
    %95 = arith.divf %93, %94 : vector<2x96xf32>
    %96 = vector.extract_strided_slice %95 {offsets = [0, 0], sizes = [2, 32], strides = [1, 1]} : vector<2x96xf32> to vector<2x32xf32>
    %97 = vector.extract_strided_slice %95 {offsets = [0, 32], sizes = [2, 32], strides = [1, 1]} : vector<2x96xf32> to vector<2x32xf32>
    %98 = vector.extract_strided_slice %95 {offsets = [0, 64], sizes = [2, 32], strides = [1, 1]} : vector<2x96xf32> to vector<2x32xf32>
    %99 = vector.extract_strided_slice %89 {offsets = [0, 96], sizes = [2, 32], strides = [1, 1]} : vector<2x128xf32> to vector<2x32xf32>
    %100 = math.tanh %99 : vector<2x32xf32>
    %101 = arith.mulf %97, %79 : vector<2x32xf32>
    %102 = arith.mulf %96, %100 : vector<2x32xf32>
    %103 = arith.addf %101, %102 : vector<2x32xf32>
    %104 = math.tanh %103 : vector<2x32xf32>
    %105 = arith.mulf %98, %104 : vector<2x32xf32>
    %c0_39 = arith.constant 0 : index
    %c3_40 = arith.constant 3 : index
    %c0_41 = arith.constant 0 : index
    %106 = vector.load %arg11[%c0_39, %c3_40, %c0_41] : memref<2x8x32xf32, #tpu.memory_space<vmem>>, vector<2x1x32xf32>
    %107 = vector.shape_cast %106 : vector<2x1x32xf32> to vector<2x32xf32>
    %108 = vector.shape_cast %105 : vector<2x32xf32> to vector<2x1x32xf32>
    tpu.vector_store %arg11[%c0_39, %c3_40, %c0_41], %108 {strides = array<i32>} : memref<2x8x32xf32, #tpu.memory_space<vmem>>, vector<2x1x32xf32>,
    %c0_42 = arith.constant 0 : index
    %c4 = arith.constant 4 : index
    %c0_43 = arith.constant 0 : index
    %109 = vector.load %arg12[%c0_42, %c4, %c0_43] : memref<2x8x128xf32, #tpu.memory_space<vmem>>, vector<2x1x128xf32>
    %110 = vector.shape_cast %109 : vector<2x1x128xf32> to vector<2x128xf32>
    %111 = arith.truncf %105 : vector<2x32xf32> to vector<2x32xbf16>
    %cst_44 = arith.constant dense<0.000000e+00> : vector<2x128xf32>
    %112 = tpu.matmul %111, %1, %cst_44 {dimension_numbers = #tpu.dot_dimension_numbers<[1], [0], [0], [1], [0, 0, 1, 1], [], []>} : vector<2x32xbf16>, vector<32x128xbf16>, vector<2x128xf32> -> vector<2x128xf32>
    %113 = arith.addf %110, %112 : vector<2x128xf32>
    %114 = vector.extract_strided_slice %113 {offsets = [0, 0], sizes = [2, 96], strides = [1, 1]} : vector<2x128xf32> to vector<2x96xf32>
    %115 = arith.negf %114 : vector<2x96xf32>
    %116 = math.exp %115 : vector<2x96xf32>
    %cst_45 = arith.constant 1.000000e+00 : f32
    %117 = vector.broadcast %cst_45 : f32 to vector<2x96xf32>
    %118 = arith.addf %117, %116 : vector<2x96xf32>
    %119 = arith.divf %117, %118 : vector<2x96xf32>
    %120 = vector.extract_strided_slice %119 {offsets = [0, 0], sizes = [2, 32], strides = [1, 1]} : vector<2x96xf32> to vector<2x32xf32>
    %121 = vector.extract_strided_slice %119 {offsets = [0, 32], sizes = [2, 32], strides = [1, 1]} : vector<2x96xf32> to vector<2x32xf32>
    %122 = vector.extract_strided_slice %119 {offsets = [0, 64], sizes = [2, 32], strides = [1, 1]} : vector<2x96xf32> to vector<2x32xf32>
    %123 = vector.extract_strided_slice %113 {offsets = [0, 96], sizes = [2, 32], strides = [1, 1]} : vector<2x128xf32> to vector<2x32xf32>
    %124 = math.tanh %123 : vector<2x32xf32>
    %125 = arith.mulf %121, %103 : vector<2x32xf32>
    %126 = arith.mulf %120, %124 : vector<2x32xf32>
    %127 = arith.addf %125, %126 : vector<2x32xf32>
    %128 = math.tanh %127 : vector<2x32xf32>
    %129 = arith.mulf %122, %128 : vector<2x32xf32>
    %c0_46 = arith.constant 0 : index
    %c4_47 = arith.constant 4 : index
    %c0_48 = arith.constant 0 : index
    %130 = vector.load %arg11[%c0_46, %c4_47, %c0_48] : memref<2x8x32xf32, #tpu.memory_space<vmem>>, vector<2x1x32xf32>
    %131 = vector.shape_cast %130 : vector<2x1x32xf32> to vector<2x32xf32>
    %132 = vector.shape_cast %129 : vector<2x32xf32> to vector<2x1x32xf32>
    tpu.vector_store %arg11[%c0_46, %c4_47, %c0_48], %132 {strides = array<i32>} : memref<2x8x32xf32, #tpu.memory_space<vmem>>, vector<2x1x32xf32>,
    %c0_49 = arith.constant 0 : index
    %c5 = arith.constant 5 : index
    %c0_50 = arith.constant 0 : index
    %133 = vector.load %arg12[%c0_49, %c5, %c0_50] : memref<2x8x128xf32, #tpu.memory_space<vmem>>, vector<2x1x128xf32>
    %134 = vector.shape_cast %133 : vector<2x1x128xf32> to vector<2x128xf32>
    %135 = arith.truncf %129 : vector<2x32xf32> to vector<2x32xbf16>
    %cst_51 = arith.constant dense<0.000000e+00> : vector<2x128xf32>
    %136 = tpu.matmul %135, %1, %cst_51 {dimension_numbers = #tpu.dot_dimension_numbers<[1], [0], [0], [1], [0, 0, 1, 1], [], []>} : vector<2x32xbf16>, vector<32x128xbf16>, vector<2x128xf32> -> vector<2x128xf32>
    %137 = arith.addf %134, %136 : vector<2x128xf32>
    %138 = vector.extract_strided_slice %137 {offsets = [0, 0], sizes = [2, 96], strides = [1, 1]} : vector<2x128xf32> to vector<2x96xf32>
    %139 = arith.negf %138 : vector<2x96xf32>
    %140 = math.exp %139 : vector<2x96xf32>
    %cst_52 = arith.constant 1.000000e+00 : f32
    %141 = vector.broadcast %cst_52 : f32 to vector<2x96xf32>
    %142 = arith.addf %141, %140 : vector<2x96xf32>
    %143 = arith.divf %141, %142 : vector<2x96xf32>
    %144 = vector.extract_strided_slice %143 {offsets = [0, 0], sizes = [2, 32], strides = [1, 1]} : vector<2x96xf32> to vector<2x32xf32>
    %145 = vector.extract_strided_slice %143 {offsets = [0, 32], sizes = [2, 32], strides = [1, 1]} : vector<2x96xf32> to vector<2x32xf32>
    %146 = vector.extract_strided_slice %143 {offsets = [0, 64], sizes = [2, 32], strides = [1, 1]} : vector<2x96xf32> to vector<2x32xf32>
    %147 = vector.extract_strided_slice %137 {offsets = [0, 96], sizes = [2, 32], strides = [1, 1]} : vector<2x128xf32> to vector<2x32xf32>
    %148 = math.tanh %147 : vector<2x32xf32>
    %149 = arith.mulf %145, %127 : vector<2x32xf32>
    %150 = arith.mulf %144, %148 : vector<2x32xf32>
    %151 = arith.addf %149, %150 : vector<2x32xf32>
    %152 = math.tanh %151 : vector<2x32xf32>
    %153 = arith.mulf %146, %152 : vector<2x32xf32>
    %c0_53 = arith.constant 0 : index
    %c5_54 = arith.constant 5 : index
    %c0_55 = arith.constant 0 : index
    %154 = vector.load %arg11[%c0_53, %c5_54, %c0_55] : memref<2x8x32xf32, #tpu.memory_space<vmem>>, vector<2x1x32xf32>
    %155 = vector.shape_cast %154 : vector<2x1x32xf32> to vector<2x32xf32>
    %156 = vector.shape_cast %153 : vector<2x32xf32> to vector<2x1x32xf32>
    tpu.vector_store %arg11[%c0_53, %c5_54, %c0_55], %156 {strides = array<i32>} : memref<2x8x32xf32, #tpu.memory_space<vmem>>, vector<2x1x32xf32>,
    %c0_56 = arith.constant 0 : index
    %c6 = arith.constant 6 : index
    %c0_57 = arith.constant 0 : index
    %157 = vector.load %arg12[%c0_56, %c6, %c0_57] : memref<2x8x128xf32, #tpu.memory_space<vmem>>, vector<2x1x128xf32>
    %158 = vector.shape_cast %157 : vector<2x1x128xf32> to vector<2x128xf32>
    %159 = arith.truncf %153 : vector<2x32xf32> to vector<2x32xbf16>
    %cst_58 = arith.constant dense<0.000000e+00> : vector<2x128xf32>
    %160 = tpu.matmul %159, %1, %cst_58 {dimension_numbers = #tpu.dot_dimension_numbers<[1], [0], [0], [1], [0, 0, 1, 1], [], []>} : vector<2x32xbf16>, vector<32x128xbf16>, vector<2x128xf32> -> vector<2x128xf32>
    %161 = arith.addf %158, %160 : vector<2x128xf32>
    %162 = vector.extract_strided_slice %161 {offsets = [0, 0], sizes = [2, 96], strides = [1, 1]} : vector<2x128xf32> to vector<2x96xf32>
    %163 = arith.negf %162 : vector<2x96xf32>
    %164 = math.exp %163 : vector<2x96xf32>
    %cst_59 = arith.constant 1.000000e+00 : f32
    %165 = vector.broadcast %cst_59 : f32 to vector<2x96xf32>
    %166 = arith.addf %165, %164 : vector<2x96xf32>
    %167 = arith.divf %165, %166 : vector<2x96xf32>
    %168 = vector.extract_strided_slice %167 {offsets = [0, 0], sizes = [2, 32], strides = [1, 1]} : vector<2x96xf32> to vector<2x32xf32>
    %169 = vector.extract_strided_slice %167 {offsets = [0, 32], sizes = [2, 32], strides = [1, 1]} : vector<2x96xf32> to vector<2x32xf32>
    %170 = vector.extract_strided_slice %167 {offsets = [0, 64], sizes = [2, 32], strides = [1, 1]} : vector<2x96xf32> to vector<2x32xf32>
    %171 = vector.extract_strided_slice %161 {offsets = [0, 96], sizes = [2, 32], strides = [1, 1]} : vector<2x128xf32> to vector<2x32xf32>
    %172 = math.tanh %171 : vector<2x32xf32>
    %173 = arith.mulf %169, %151 : vector<2x32xf32>
    %174 = arith.mulf %168, %172 : vector<2x32xf32>
    %175 = arith.addf %173, %174 : vector<2x32xf32>
    %176 = math.tanh %175 : vector<2x32xf32>
    %177 = arith.mulf %170, %176 : vector<2x32xf32>
    %c0_60 = arith.constant 0 : index
    %c6_61 = arith.constant 6 : index
    %c0_62 = arith.constant 0 : index
    %178 = vector.load %arg11[%c0_60, %c6_61, %c0_62] : memref<2x8x32xf32, #tpu.memory_space<vmem>>, vector<2x1x32xf32>
    %179 = vector.shape_cast %178 : vector<2x1x32xf32> to vector<2x32xf32>
    %180 = vector.shape_cast %177 : vector<2x32xf32> to vector<2x1x32xf32>
    tpu.vector_store %arg11[%c0_60, %c6_61, %c0_62], %180 {strides = array<i32>} : memref<2x8x32xf32, #tpu.memory_space<vmem>>, vector<2x1x32xf32>,
    %c0_63 = arith.constant 0 : index
    %c7 = arith.constant 7 : index
    %c0_64 = arith.constant 0 : index
    %181 = vector.load %arg12[%c0_63, %c7, %c0_64] : memref<2x8x128xf32, #tpu.memory_space<vmem>>, vector<2x1x128xf32>
    %182 = vector.shape_cast %181 : vector<2x1x128xf32> to vector<2x128xf32>
    %183 = arith.truncf %177 : vector<2x32xf32> to vector<2x32xbf16>
    %cst_65 = arith.constant dense<0.000000e+00> : vector<2x128xf32>
    %184 = tpu.matmul %183, %1, %cst_65 {dimension_numbers = #tpu.dot_dimension_numbers<[1], [0], [0], [1], [0, 0, 1, 1], [], []>} : vector<2x32xbf16>, vector<32x128xbf16>, vector<2x128xf32> -> vector<2x128xf32>
    %185 = arith.addf %182, %184 : vector<2x128xf32>
    %186 = vector.extract_strided_slice %185 {offsets = [0, 0], sizes = [2, 96], strides = [1, 1]} : vector<2x128xf32> to vector<2x96xf32>
    %187 = arith.negf %186 : vector<2x96xf32>
    %188 = math.exp %187 : vector<2x96xf32>
    %cst_66 = arith.constant 1.000000e+00 : f32
    %189 = vector.broadcast %cst_66 : f32 to vector<2x96xf32>
    %190 = arith.addf %189, %188 : vector<2x96xf32>
    %191 = arith.divf %189, %190 : vector<2x96xf32>
    %192 = vector.extract_strided_slice %191 {offsets = [0, 0], sizes = [2, 32], strides = [1, 1]} : vector<2x96xf32> to vector<2x32xf32>
    %193 = vector.extract_strided_slice %191 {offsets = [0, 32], sizes = [2, 32], strides = [1, 1]} : vector<2x96xf32> to vector<2x32xf32>
    %194 = vector.extract_strided_slice %191 {offsets = [0, 64], sizes = [2, 32], strides = [1, 1]} : vector<2x96xf32> to vector<2x32xf32>
    %195 = vector.extract_strided_slice %185 {offsets = [0, 96], sizes = [2, 32], strides = [1, 1]} : vector<2x128xf32> to vector<2x32xf32>
    %196 = math.tanh %195 : vector<2x32xf32>
    %197 = arith.mulf %193, %175 : vector<2x32xf32>
    %198 = arith.mulf %192, %196 : vector<2x32xf32>
    %199 = arith.addf %197, %198 : vector<2x32xf32>
    %200 = math.tanh %199 : vector<2x32xf32>
    %201 = arith.mulf %194, %200 : vector<2x32xf32>
    %c0_67 = arith.constant 0 : index
    %c7_68 = arith.constant 7 : index
    %c0_69 = arith.constant 0 : index
    %202 = vector.load %arg11[%c0_67, %c7_68, %c0_69] : memref<2x8x32xf32, #tpu.memory_space<vmem>>, vector<2x1x32xf32>
    %203 = vector.shape_cast %202 : vector<2x1x32xf32> to vector<2x32xf32>
    %204 = vector.shape_cast %201 : vector<2x32xf32> to vector<2x1x32xf32>
    tpu.vector_store %arg11[%c0_67, %c7_68, %c0_69], %204 {strides = array<i32>} : memref<2x8x32xf32, #tpu.memory_space<vmem>>, vector<2x1x32xf32>,
    %c0_70 = arith.constant 0 : index
    %c0_71 = arith.constant 0 : index
    %205 = vector.load %arg5[%c0_70, %c0_71] : memref<32x128xbf16, #tpu.memory_space<vmem>>, vector<32x128xbf16>
    %c0_72 = arith.constant 0 : index
    %c0_73 = arith.constant 0 : index
    %206 = vector.load %arg6[%c0_72, %c0_73] : memref<32x128xbf16, #tpu.memory_space<vmem>>, vector<32x128xbf16>
    %c0_74 = arith.constant 0 : index
    %c0_75 = arith.constant 0 : index
    %207 = vector.load %arg7[%c0_74, %c0_75] : memref<1x128xf32, #tpu.memory_space<vmem>>, vector<1x128xf32>
    %c0_76 = arith.constant 0 : index
    %c0_77 = arith.constant 0 : index
    %c0_78 = arith.constant 0 : index
    %208 = vector.load %arg11[%c0_76, %c0_77, %c0_78] : memref<2x8x32xf32, #tpu.memory_space<vmem>>, vector<2x8x32xf32>
    %209 = vector.shape_cast %208 : vector<2x8x32xf32> to vector<16x32xf32>
    %210 = arith.truncf %209 : vector<16x32xf32> to vector<16x32xbf16>
    %cst_79 = arith.constant dense<0.000000e+00> : vector<16x128xf32>
    %211 = tpu.matmul %210, %205, %cst_79 {dimension_numbers = #tpu.dot_dimension_numbers<[1], [0], [0], [1], [0, 0, 1, 1], [], []>} : vector<16x32xbf16>, vector<32x128xbf16>, vector<16x128xf32> -> vector<16x128xf32>
    %212 = vector.broadcast %207 : vector<1x128xf32> to vector<16x128xf32>
    %213 = arith.addf %211, %212 : vector<16x128xf32>
    %214 = vector.shape_cast %213 : vector<16x128xf32> to vector<2x8x128xf32>
    %c0_80 = arith.constant 0 : index
    %c0_81 = arith.constant 0 : index
    %c0_82 = arith.constant 0 : index
    %215 = vector.load %arg12[%c0_80, %c0_81, %c0_82] : memref<2x8x128xf32, #tpu.memory_space<vmem>>, vector<2x8x128xf32>
    tpu.vector_store %arg12[%c0_80, %c0_81, %c0_82], %214 {strides = array<i32>} : memref<2x8x128xf32, #tpu.memory_space<vmem>>, vector<2x8x128xf32>,
    %cst_83 = arith.constant 0.000000e+00 : f32
    %216 = vector.broadcast %cst_83 : f32 to vector<2x32xf32>
    %cst_84 = arith.constant 0.000000e+00 : f32
    %217 = vector.broadcast %cst_84 : f32 to vector<2x32xf32>
    %c0_85 = arith.constant 0 : index
    %c0_86 = arith.constant 0 : index
    %c0_87 = arith.constant 0 : index
    %218 = vector.load %arg12[%c0_85, %c0_86, %c0_87] : memref<2x8x128xf32, #tpu.memory_space<vmem>>, vector<2x1x128xf32>
    %219 = vector.shape_cast %218 : vector<2x1x128xf32> to vector<2x128xf32>
    %220 = arith.truncf %216 : vector<2x32xf32> to vector<2x32xbf16>
    %cst_88 = arith.constant dense<0.000000e+00> : vector<2x128xf32>
    %221 = tpu.matmul %220, %206, %cst_88 {dimension_numbers = #tpu.dot_dimension_numbers<[1], [0], [0], [1], [0, 0, 1, 1], [], []>} : vector<2x32xbf16>, vector<32x128xbf16>, vector<2x128xf32> -> vector<2x128xf32>
    %222 = arith.addf %219, %221 : vector<2x128xf32>
    %223 = vector.extract_strided_slice %222 {offsets = [0, 0], sizes = [2, 96], strides = [1, 1]} : vector<2x128xf32> to vector<2x96xf32>
    %224 = arith.negf %223 : vector<2x96xf32>
    %225 = math.exp %224 : vector<2x96xf32>
    %cst_89 = arith.constant 1.000000e+00 : f32
    %226 = vector.broadcast %cst_89 : f32 to vector<2x96xf32>
    %227 = arith.addf %226, %225 : vector<2x96xf32>
    %228 = arith.divf %226, %227 : vector<2x96xf32>
    %229 = vector.extract_strided_slice %228 {offsets = [0, 0], sizes = [2, 32], strides = [1, 1]} : vector<2x96xf32> to vector<2x32xf32>
    %230 = vector.extract_strided_slice %228 {offsets = [0, 32], sizes = [2, 32], strides = [1, 1]} : vector<2x96xf32> to vector<2x32xf32>
    %231 = vector.extract_strided_slice %228 {offsets = [0, 64], sizes = [2, 32], strides = [1, 1]} : vector<2x96xf32> to vector<2x32xf32>
    %232 = vector.extract_strided_slice %222 {offsets = [0, 96], sizes = [2, 32], strides = [1, 1]} : vector<2x128xf32> to vector<2x32xf32>
    %233 = math.tanh %232 : vector<2x32xf32>
    %234 = arith.mulf %230, %217 : vector<2x32xf32>
    %235 = arith.mulf %229, %233 : vector<2x32xf32>
    %236 = arith.addf %234, %235 : vector<2x32xf32>
    %237 = math.tanh %236 : vector<2x32xf32>
    %238 = arith.mulf %231, %237 : vector<2x32xf32>
    %c0_90 = arith.constant 0 : index
    %c0_91 = arith.constant 0 : index
    %c0_92 = arith.constant 0 : index
    %239 = vector.load %arg11[%c0_90, %c0_91, %c0_92] : memref<2x8x32xf32, #tpu.memory_space<vmem>>, vector<2x1x32xf32>
    %240 = vector.shape_cast %239 : vector<2x1x32xf32> to vector<2x32xf32>
    %241 = vector.shape_cast %238 : vector<2x32xf32> to vector<2x1x32xf32>
    tpu.vector_store %arg11[%c0_90, %c0_91, %c0_92], %241 {strides = array<i32>} : memref<2x8x32xf32, #tpu.memory_space<vmem>>, vector<2x1x32xf32>,
    %c0_93 = arith.constant 0 : index
    %c1_94 = arith.constant 1 : index
    %c0_95 = arith.constant 0 : index
    %242 = vector.load %arg12[%c0_93, %c1_94, %c0_95] : memref<2x8x128xf32, #tpu.memory_space<vmem>>, vector<2x1x128xf32>
    %243 = vector.shape_cast %242 : vector<2x1x128xf32> to vector<2x128xf32>
    %244 = arith.truncf %238 : vector<2x32xf32> to vector<2x32xbf16>
    %cst_96 = arith.constant dense<0.000000e+00> : vector<2x128xf32>
    %245 = tpu.matmul %244, %206, %cst_96 {dimension_numbers = #tpu.dot_dimension_numbers<[1], [0], [0], [1], [0, 0, 1, 1], [], []>} : vector<2x32xbf16>, vector<32x128xbf16>, vector<2x128xf32> -> vector<2x128xf32>
    %246 = arith.addf %243, %245 : vector<2x128xf32>
    %247 = vector.extract_strided_slice %246 {offsets = [0, 0], sizes = [2, 96], strides = [1, 1]} : vector<2x128xf32> to vector<2x96xf32>
    %248 = arith.negf %247 : vector<2x96xf32>
    %249 = math.exp %248 : vector<2x96xf32>
    %cst_97 = arith.constant 1.000000e+00 : f32
    %250 = vector.broadcast %cst_97 : f32 to vector<2x96xf32>
    %251 = arith.addf %250, %249 : vector<2x96xf32>
    %252 = arith.divf %250, %251 : vector<2x96xf32>
    %253 = vector.extract_strided_slice %252 {offsets = [0, 0], sizes = [2, 32], strides = [1, 1]} : vector<2x96xf32> to vector<2x32xf32>
    %254 = vector.extract_strided_slice %252 {offsets = [0, 32], sizes = [2, 32], strides = [1, 1]} : vector<2x96xf32> to vector<2x32xf32>
    %255 = vector.extract_strided_slice %252 {offsets = [0, 64], sizes = [2, 32], strides = [1, 1]} : vector<2x96xf32> to vector<2x32xf32>
    %256 = vector.extract_strided_slice %246 {offsets = [0, 96], sizes = [2, 32], strides = [1, 1]} : vector<2x128xf32> to vector<2x32xf32>
    %257 = math.tanh %256 : vector<2x32xf32>
    %258 = arith.mulf %254, %236 : vector<2x32xf32>
    %259 = arith.mulf %253, %257 : vector<2x32xf32>
    %260 = arith.addf %258, %259 : vector<2x32xf32>
    %261 = math.tanh %260 : vector<2x32xf32>
    %262 = arith.mulf %255, %261 : vector<2x32xf32>
    %c0_98 = arith.constant 0 : index
    %c1_99 = arith.constant 1 : index
    %c0_100 = arith.constant 0 : index
    %263 = vector.load %arg11[%c0_98, %c1_99, %c0_100] : memref<2x8x32xf32, #tpu.memory_space<vmem>>, vector<2x1x32xf32>
    %264 = vector.shape_cast %263 : vector<2x1x32xf32> to vector<2x32xf32>
    %265 = vector.shape_cast %262 : vector<2x32xf32> to vector<2x1x32xf32>
    tpu.vector_store %arg11[%c0_98, %c1_99, %c0_100], %265 {strides = array<i32>} : memref<2x8x32xf32, #tpu.memory_space<vmem>>, vector<2x1x32xf32>,
    %c0_101 = arith.constant 0 : index
    %c2_102 = arith.constant 2 : index
    %c0_103 = arith.constant 0 : index
    %266 = vector.load %arg12[%c0_101, %c2_102, %c0_103] : memref<2x8x128xf32, #tpu.memory_space<vmem>>, vector<2x1x128xf32>
    %267 = vector.shape_cast %266 : vector<2x1x128xf32> to vector<2x128xf32>
    %268 = arith.truncf %262 : vector<2x32xf32> to vector<2x32xbf16>
    %cst_104 = arith.constant dense<0.000000e+00> : vector<2x128xf32>
    %269 = tpu.matmul %268, %206, %cst_104 {dimension_numbers = #tpu.dot_dimension_numbers<[1], [0], [0], [1], [0, 0, 1, 1], [], []>} : vector<2x32xbf16>, vector<32x128xbf16>, vector<2x128xf32> -> vector<2x128xf32>
    %270 = arith.addf %267, %269 : vector<2x128xf32>
    %271 = vector.extract_strided_slice %270 {offsets = [0, 0], sizes = [2, 96], strides = [1, 1]} : vector<2x128xf32> to vector<2x96xf32>
    %272 = arith.negf %271 : vector<2x96xf32>
    %273 = math.exp %272 : vector<2x96xf32>
    %cst_105 = arith.constant 1.000000e+00 : f32
    %274 = vector.broadcast %cst_105 : f32 to vector<2x96xf32>
    %275 = arith.addf %274, %273 : vector<2x96xf32>
    %276 = arith.divf %274, %275 : vector<2x96xf32>
    %277 = vector.extract_strided_slice %276 {offsets = [0, 0], sizes = [2, 32], strides = [1, 1]} : vector<2x96xf32> to vector<2x32xf32>
    %278 = vector.extract_strided_slice %276 {offsets = [0, 32], sizes = [2, 32], strides = [1, 1]} : vector<2x96xf32> to vector<2x32xf32>
    %279 = vector.extract_strided_slice %276 {offsets = [0, 64], sizes = [2, 32], strides = [1, 1]} : vector<2x96xf32> to vector<2x32xf32>
    %280 = vector.extract_strided_slice %270 {offsets = [0, 96], sizes = [2, 32], strides = [1, 1]} : vector<2x128xf32> to vector<2x32xf32>
    %281 = math.tanh %280 : vector<2x32xf32>
    %282 = arith.mulf %278, %260 : vector<2x32xf32>
    %283 = arith.mulf %277, %281 : vector<2x32xf32>
    %284 = arith.addf %282, %283 : vector<2x32xf32>
    %285 = math.tanh %284 : vector<2x32xf32>
    %286 = arith.mulf %279, %285 : vector<2x32xf32>
    %c0_106 = arith.constant 0 : index
    %c2_107 = arith.constant 2 : index
    %c0_108 = arith.constant 0 : index
    %287 = vector.load %arg11[%c0_106, %c2_107, %c0_108] : memref<2x8x32xf32, #tpu.memory_space<vmem>>, vector<2x1x32xf32>
    %288 = vector.shape_cast %287 : vector<2x1x32xf32> to vector<2x32xf32>
    %289 = vector.shape_cast %286 : vector<2x32xf32> to vector<2x1x32xf32>
    tpu.vector_store %arg11[%c0_106, %c2_107, %c0_108], %289 {strides = array<i32>} : memref<2x8x32xf32, #tpu.memory_space<vmem>>, vector<2x1x32xf32>,
    %c0_109 = arith.constant 0 : index
    %c3_110 = arith.constant 3 : index
    %c0_111 = arith.constant 0 : index
    %290 = vector.load %arg12[%c0_109, %c3_110, %c0_111] : memref<2x8x128xf32, #tpu.memory_space<vmem>>, vector<2x1x128xf32>
    %291 = vector.shape_cast %290 : vector<2x1x128xf32> to vector<2x128xf32>
    %292 = arith.truncf %286 : vector<2x32xf32> to vector<2x32xbf16>
    %cst_112 = arith.constant dense<0.000000e+00> : vector<2x128xf32>
    %293 = tpu.matmul %292, %206, %cst_112 {dimension_numbers = #tpu.dot_dimension_numbers<[1], [0], [0], [1], [0, 0, 1, 1], [], []>} : vector<2x32xbf16>, vector<32x128xbf16>, vector<2x128xf32> -> vector<2x128xf32>
    %294 = arith.addf %291, %293 : vector<2x128xf32>
    %295 = vector.extract_strided_slice %294 {offsets = [0, 0], sizes = [2, 96], strides = [1, 1]} : vector<2x128xf32> to vector<2x96xf32>
    %296 = arith.negf %295 : vector<2x96xf32>
    %297 = math.exp %296 : vector<2x96xf32>
    %cst_113 = arith.constant 1.000000e+00 : f32
    %298 = vector.broadcast %cst_113 : f32 to vector<2x96xf32>
    %299 = arith.addf %298, %297 : vector<2x96xf32>
    %300 = arith.divf %298, %299 : vector<2x96xf32>
    %301 = vector.extract_strided_slice %300 {offsets = [0, 0], sizes = [2, 32], strides = [1, 1]} : vector<2x96xf32> to vector<2x32xf32>
    %302 = vector.extract_strided_slice %300 {offsets = [0, 32], sizes = [2, 32], strides = [1, 1]} : vector<2x96xf32> to vector<2x32xf32>
    %303 = vector.extract_strided_slice %300 {offsets = [0, 64], sizes = [2, 32], strides = [1, 1]} : vector<2x96xf32> to vector<2x32xf32>
    %304 = vector.extract_strided_slice %294 {offsets = [0, 96], sizes = [2, 32], strides = [1, 1]} : vector<2x128xf32> to vector<2x32xf32>
    %305 = math.tanh %304 : vector<2x32xf32>
    %306 = arith.mulf %302, %284 : vector<2x32xf32>
    %307 = arith.mulf %301, %305 : vector<2x32xf32>
    %308 = arith.addf %306, %307 : vector<2x32xf32>
    %309 = math.tanh %308 : vector<2x32xf32>
    %310 = arith.mulf %303, %309 : vector<2x32xf32>
    %c0_114 = arith.constant 0 : index
    %c3_115 = arith.constant 3 : index
    %c0_116 = arith.constant 0 : index
    %311 = vector.load %arg11[%c0_114, %c3_115, %c0_116] : memref<2x8x32xf32, #tpu.memory_space<vmem>>, vector<2x1x32xf32>
    %312 = vector.shape_cast %311 : vector<2x1x32xf32> to vector<2x32xf32>
    %313 = vector.shape_cast %310 : vector<2x32xf32> to vector<2x1x32xf32>
    tpu.vector_store %arg11[%c0_114, %c3_115, %c0_116], %313 {strides = array<i32>} : memref<2x8x32xf32, #tpu.memory_space<vmem>>, vector<2x1x32xf32>,
    %c0_117 = arith.constant 0 : index
    %c4_118 = arith.constant 4 : index
    %c0_119 = arith.constant 0 : index
    %314 = vector.load %arg12[%c0_117, %c4_118, %c0_119] : memref<2x8x128xf32, #tpu.memory_space<vmem>>, vector<2x1x128xf32>
    %315 = vector.shape_cast %314 : vector<2x1x128xf32> to vector<2x128xf32>
    %316 = arith.truncf %310 : vector<2x32xf32> to vector<2x32xbf16>
    %cst_120 = arith.constant dense<0.000000e+00> : vector<2x128xf32>
    %317 = tpu.matmul %316, %206, %cst_120 {dimension_numbers = #tpu.dot_dimension_numbers<[1], [0], [0], [1], [0, 0, 1, 1], [], []>} : vector<2x32xbf16>, vector<32x128xbf16>, vector<2x128xf32> -> vector<2x128xf32>
    %318 = arith.addf %315, %317 : vector<2x128xf32>
    %319 = vector.extract_strided_slice %318 {offsets = [0, 0], sizes = [2, 96], strides = [1, 1]} : vector<2x128xf32> to vector<2x96xf32>
    %320 = arith.negf %319 : vector<2x96xf32>
    %321 = math.exp %320 : vector<2x96xf32>
    %cst_121 = arith.constant 1.000000e+00 : f32
    %322 = vector.broadcast %cst_121 : f32 to vector<2x96xf32>
    %323 = arith.addf %322, %321 : vector<2x96xf32>
    %324 = arith.divf %322, %323 : vector<2x96xf32>
    %325 = vector.extract_strided_slice %324 {offsets = [0, 0], sizes = [2, 32], strides = [1, 1]} : vector<2x96xf32> to vector<2x32xf32>
    %326 = vector.extract_strided_slice %324 {offsets = [0, 32], sizes = [2, 32], strides = [1, 1]} : vector<2x96xf32> to vector<2x32xf32>
    %327 = vector.extract_strided_slice %324 {offsets = [0, 64], sizes = [2, 32], strides = [1, 1]} : vector<2x96xf32> to vector<2x32xf32>
    %328 = vector.extract_strided_slice %318 {offsets = [0, 96], sizes = [2, 32], strides = [1, 1]} : vector<2x128xf32> to vector<2x32xf32>
    %329 = math.tanh %328 : vector<2x32xf32>
    %330 = arith.mulf %326, %308 : vector<2x32xf32>
    %331 = arith.mulf %325, %329 : vector<2x32xf32>
    %332 = arith.addf %330, %331 : vector<2x32xf32>
    %333 = math.tanh %332 : vector<2x32xf32>
    %334 = arith.mulf %327, %333 : vector<2x32xf32>
    %c0_122 = arith.constant 0 : index
    %c4_123 = arith.constant 4 : index
    %c0_124 = arith.constant 0 : index
    %335 = vector.load %arg11[%c0_122, %c4_123, %c0_124] : memref<2x8x32xf32, #tpu.memory_space<vmem>>, vector<2x1x32xf32>
    %336 = vector.shape_cast %335 : vector<2x1x32xf32> to vector<2x32xf32>
    %337 = vector.shape_cast %334 : vector<2x32xf32> to vector<2x1x32xf32>
    tpu.vector_store %arg11[%c0_122, %c4_123, %c0_124], %337 {strides = array<i32>} : memref<2x8x32xf32, #tpu.memory_space<vmem>>, vector<2x1x32xf32>,
    %c0_125 = arith.constant 0 : index
    %c5_126 = arith.constant 5 : index
    %c0_127 = arith.constant 0 : index
    %338 = vector.load %arg12[%c0_125, %c5_126, %c0_127] : memref<2x8x128xf32, #tpu.memory_space<vmem>>, vector<2x1x128xf32>
    %339 = vector.shape_cast %338 : vector<2x1x128xf32> to vector<2x128xf32>
    %340 = arith.truncf %334 : vector<2x32xf32> to vector<2x32xbf16>
    %cst_128 = arith.constant dense<0.000000e+00> : vector<2x128xf32>
    %341 = tpu.matmul %340, %206, %cst_128 {dimension_numbers = #tpu.dot_dimension_numbers<[1], [0], [0], [1], [0, 0, 1, 1], [], []>} : vector<2x32xbf16>, vector<32x128xbf16>, vector<2x128xf32> -> vector<2x128xf32>
    %342 = arith.addf %339, %341 : vector<2x128xf32>
    %343 = vector.extract_strided_slice %342 {offsets = [0, 0], sizes = [2, 96], strides = [1, 1]} : vector<2x128xf32> to vector<2x96xf32>
    %344 = arith.negf %343 : vector<2x96xf32>
    %345 = math.exp %344 : vector<2x96xf32>
    %cst_129 = arith.constant 1.000000e+00 : f32
    %346 = vector.broadcast %cst_129 : f32 to vector<2x96xf32>
    %347 = arith.addf %346, %345 : vector<2x96xf32>
    %348 = arith.divf %346, %347 : vector<2x96xf32>
    %349 = vector.extract_strided_slice %348 {offsets = [0, 0], sizes = [2, 32], strides = [1, 1]} : vector<2x96xf32> to vector<2x32xf32>
    %350 = vector.extract_strided_slice %348 {offsets = [0, 32], sizes = [2, 32], strides = [1, 1]} : vector<2x96xf32> to vector<2x32xf32>
    %351 = vector.extract_strided_slice %348 {offsets = [0, 64], sizes = [2, 32], strides = [1, 1]} : vector<2x96xf32> to vector<2x32xf32>
    %352 = vector.extract_strided_slice %342 {offsets = [0, 96], sizes = [2, 32], strides = [1, 1]} : vector<2x128xf32> to vector<2x32xf32>
    %353 = math.tanh %352 : vector<2x32xf32>
    %354 = arith.mulf %350, %332 : vector<2x32xf32>
    %355 = arith.mulf %349, %353 : vector<2x32xf32>
    %356 = arith.addf %354, %355 : vector<2x32xf32>
    %357 = math.tanh %356 : vector<2x32xf32>
    %358 = arith.mulf %351, %357 : vector<2x32xf32>
    %c0_130 = arith.constant 0 : index
    %c5_131 = arith.constant 5 : index
    %c0_132 = arith.constant 0 : index
    %359 = vector.load %arg11[%c0_130, %c5_131, %c0_132] : memref<2x8x32xf32, #tpu.memory_space<vmem>>, vector<2x1x32xf32>
    %360 = vector.shape_cast %359 : vector<2x1x32xf32> to vector<2x32xf32>
    %361 = vector.shape_cast %358 : vector<2x32xf32> to vector<2x1x32xf32>
    tpu.vector_store %arg11[%c0_130, %c5_131, %c0_132], %361 {strides = array<i32>} : memref<2x8x32xf32, #tpu.memory_space<vmem>>, vector<2x1x32xf32>,
    %c0_133 = arith.constant 0 : index
    %c6_134 = arith.constant 6 : index
    %c0_135 = arith.constant 0 : index
    %362 = vector.load %arg12[%c0_133, %c6_134, %c0_135] : memref<2x8x128xf32, #tpu.memory_space<vmem>>, vector<2x1x128xf32>
    %363 = vector.shape_cast %362 : vector<2x1x128xf32> to vector<2x128xf32>
    %364 = arith.truncf %358 : vector<2x32xf32> to vector<2x32xbf16>
    %cst_136 = arith.constant dense<0.000000e+00> : vector<2x128xf32>
    %365 = tpu.matmul %364, %206, %cst_136 {dimension_numbers = #tpu.dot_dimension_numbers<[1], [0], [0], [1], [0, 0, 1, 1], [], []>} : vector<2x32xbf16>, vector<32x128xbf16>, vector<2x128xf32> -> vector<2x128xf32>
    %366 = arith.addf %363, %365 : vector<2x128xf32>
    %367 = vector.extract_strided_slice %366 {offsets = [0, 0], sizes = [2, 96], strides = [1, 1]} : vector<2x128xf32> to vector<2x96xf32>
    %368 = arith.negf %367 : vector<2x96xf32>
    %369 = math.exp %368 : vector<2x96xf32>
    %cst_137 = arith.constant 1.000000e+00 : f32
    %370 = vector.broadcast %cst_137 : f32 to vector<2x96xf32>
    %371 = arith.addf %370, %369 : vector<2x96xf32>
    %372 = arith.divf %370, %371 : vector<2x96xf32>
    %373 = vector.extract_strided_slice %372 {offsets = [0, 0], sizes = [2, 32], strides = [1, 1]} : vector<2x96xf32> to vector<2x32xf32>
    %374 = vector.extract_strided_slice %372 {offsets = [0, 32], sizes = [2, 32], strides = [1, 1]} : vector<2x96xf32> to vector<2x32xf32>
    %375 = vector.extract_strided_slice %372 {offsets = [0, 64], sizes = [2, 32], strides = [1, 1]} : vector<2x96xf32> to vector<2x32xf32>
    %376 = vector.extract_strided_slice %366 {offsets = [0, 96], sizes = [2, 32], strides = [1, 1]} : vector<2x128xf32> to vector<2x32xf32>
    %377 = math.tanh %376 : vector<2x32xf32>
    %378 = arith.mulf %374, %356 : vector<2x32xf32>
    %379 = arith.mulf %373, %377 : vector<2x32xf32>
    %380 = arith.addf %378, %379 : vector<2x32xf32>
    %381 = math.tanh %380 : vector<2x32xf32>
    %382 = arith.mulf %375, %381 : vector<2x32xf32>
    %c0_138 = arith.constant 0 : index
    %c6_139 = arith.constant 6 : index
    %c0_140 = arith.constant 0 : index
    %383 = vector.load %arg11[%c0_138, %c6_139, %c0_140] : memref<2x8x32xf32, #tpu.memory_space<vmem>>, vector<2x1x32xf32>
    %384 = vector.shape_cast %383 : vector<2x1x32xf32> to vector<2x32xf32>
    %385 = vector.shape_cast %382 : vector<2x32xf32> to vector<2x1x32xf32>
    tpu.vector_store %arg11[%c0_138, %c6_139, %c0_140], %385 {strides = array<i32>} : memref<2x8x32xf32, #tpu.memory_space<vmem>>, vector<2x1x32xf32>,
    %c0_141 = arith.constant 0 : index
    %c7_142 = arith.constant 7 : index
    %c0_143 = arith.constant 0 : index
    %386 = vector.load %arg12[%c0_141, %c7_142, %c0_143] : memref<2x8x128xf32, #tpu.memory_space<vmem>>, vector<2x1x128xf32>
    %387 = vector.shape_cast %386 : vector<2x1x128xf32> to vector<2x128xf32>
    %388 = arith.truncf %382 : vector<2x32xf32> to vector<2x32xbf16>
    %cst_144 = arith.constant dense<0.000000e+00> : vector<2x128xf32>
    %389 = tpu.matmul %388, %206, %cst_144 {dimension_numbers = #tpu.dot_dimension_numbers<[1], [0], [0], [1], [0, 0, 1, 1], [], []>} : vector<2x32xbf16>, vector<32x128xbf16>, vector<2x128xf32> -> vector<2x128xf32>
    %390 = arith.addf %387, %389 : vector<2x128xf32>
    %391 = vector.extract_strided_slice %390 {offsets = [0, 0], sizes = [2, 96], strides = [1, 1]} : vector<2x128xf32> to vector<2x96xf32>
    %392 = arith.negf %391 : vector<2x96xf32>
    %393 = math.exp %392 : vector<2x96xf32>
    %cst_145 = arith.constant 1.000000e+00 : f32
    %394 = vector.broadcast %cst_145 : f32 to vector<2x96xf32>
    %395 = arith.addf %394, %393 : vector<2x96xf32>
    %396 = arith.divf %394, %395 : vector<2x96xf32>
    %397 = vector.extract_strided_slice %396 {offsets = [0, 0], sizes = [2, 32], strides = [1, 1]} : vector<2x96xf32> to vector<2x32xf32>
    %398 = vector.extract_strided_slice %396 {offsets = [0, 32], sizes = [2, 32], strides = [1, 1]} : vector<2x96xf32> to vector<2x32xf32>
    %399 = vector.extract_strided_slice %396 {offsets = [0, 64], sizes = [2, 32], strides = [1, 1]} : vector<2x96xf32> to vector<2x32xf32>
    %400 = vector.extract_strided_slice %390 {offsets = [0, 96], sizes = [2, 32], strides = [1, 1]} : vector<2x128xf32> to vector<2x32xf32>
    %401 = math.tanh %400 : vector<2x32xf32>
    %402 = arith.mulf %398, %380 : vector<2x32xf32>
    %403 = arith.mulf %397, %401 : vector<2x32xf32>
    %404 = arith.addf %402, %403 : vector<2x32xf32>
    %405 = math.tanh %404 : vector<2x32xf32>
    %406 = arith.mulf %399, %405 : vector<2x32xf32>
    %c0_146 = arith.constant 0 : index
    %c7_147 = arith.constant 7 : index
    %c0_148 = arith.constant 0 : index
    %407 = vector.load %arg11[%c0_146, %c7_147, %c0_148] : memref<2x8x32xf32, #tpu.memory_space<vmem>>, vector<2x1x32xf32>
    %408 = vector.shape_cast %407 : vector<2x1x32xf32> to vector<2x32xf32>
    %409 = vector.shape_cast %406 : vector<2x32xf32> to vector<2x1x32xf32>
    tpu.vector_store %arg11[%c0_146, %c7_147, %c0_148], %409 {strides = array<i32>} : memref<2x8x32xf32, #tpu.memory_space<vmem>>, vector<2x1x32xf32>,
    %c0_149 = arith.constant 0 : index
    %c0_150 = arith.constant 0 : index
    %410 = vector.load %arg8[%c0_149, %c0_150] : memref<32x4xbf16, #tpu.memory_space<vmem>>, vector<32x4xbf16>
    %c0_151 = arith.constant 0 : index
    %c0_152 = arith.constant 0 : index
    %411 = vector.load %arg9[%c0_151, %c0_152] : memref<1x4xf32, #tpu.memory_space<vmem>>, vector<1x4xf32>
    %c0_153 = arith.constant 0 : index
    %c0_154 = arith.constant 0 : index
    %c0_155 = arith.constant 0 : index
    %412 = vector.load %arg11[%c0_153, %c0_154, %c0_155] : memref<2x8x32xf32, #tpu.memory_space<vmem>>, vector<2x8x32xf32>
    %413 = vector.shape_cast %412 : vector<2x8x32xf32> to vector<16x32xf32>
    %414 = arith.truncf %413 : vector<16x32xf32> to vector<16x32xbf16>
    %cst_156 = arith.constant dense<0.000000e+00> : vector<16x4xf32>
    %415 = tpu.matmul %414, %410, %cst_156 {dimension_numbers = #tpu.dot_dimension_numbers<[1], [0], [0], [1], [0, 0, 1, 1], [], []>} : vector<16x32xbf16>, vector<32x4xbf16>, vector<16x4xf32> -> vector<16x4xf32>
    %416 = vector.broadcast %411 : vector<1x4xf32> to vector<16x4xf32>
    %417 = arith.addf %415, %416 : vector<16x4xf32>
    %418 = arith.negf %417 : vector<16x4xf32>
    %419 = math.exp %418 : vector<16x4xf32>
    %cst_157 = arith.constant 1.000000e+00 : f32
    %420 = vector.broadcast %cst_157 : f32 to vector<16x4xf32>
    %421 = arith.addf %420, %419 : vector<16x4xf32>
    %422 = arith.divf %420, %421 : vector<16x4xf32>
    %423 = vector.shape_cast %422 : vector<16x4xf32> to vector<2x8x4xf32>
    %c0_158 = arith.constant 0 : index
    %c0_159 = arith.constant 0 : index
    %c0_160 = arith.constant 0 : index
    %424 = vector.load %arg10[%c0_158, %c0_159, %c0_160] : memref<2x8x4xf32, #tpu.memory_space<vmem>>, vector<2x8x4xf32>
    tpu.vector_store %arg10[%c0_158, %c0_159, %c0_160], %423 {strides = array<i32>} : memref<2x8x4xf32, #tpu.memory_space<vmem>>, vector<2x8x4xf32>,
    return
  }
  func.func @transform_0(%arg0: i32) -> (i32, i32, i32) {
    %c0_i32 = arith.constant 0 : i32
    %c0_i32_0 = arith.constant 0 : i32
    %c0_i32_1 = arith.constant 0 : i32
    return %arg0, %c0_i32, %c0_i32_0 : i32, i32, i32
  }
  func.func @transform_1(%arg0: i32) -> (i32, i32) {
    %c0_i32 = arith.constant 0 : i32
    %c0_i32_0 = arith.constant 0 : i32
    %c0_i32_1 = arith.constant 0 : i32
    return %c0_i32, %c0_i32_0 : i32, i32
  }
  func.func @transform_2(%arg0: i32) -> (i32, i32) {
    %c0_i32 = arith.constant 0 : i32
    %c0_i32_0 = arith.constant 0 : i32
    %c0_i32_1 = arith.constant 0 : i32
    return %c0_i32, %c0_i32_0 : i32, i32
  }
  func.func @transform_3(%arg0: i32) -> (i32, i32) {
    %c0_i32 = arith.constant 0 : i32
    %c0_i32_0 = arith.constant 0 : i32
    %c0_i32_1 = arith.constant 0 : i32
    return %c0_i32, %c0_i32_0 : i32, i32
  }
  func.func @transform_4(%arg0: i32) -> (i32, i32) {
    %c0_i32 = arith.constant 0 : i32
    %c0_i32_0 = arith.constant 0 : i32
    %c0_i32_1 = arith.constant 0 : i32
    return %c0_i32, %c0_i32_0 : i32, i32
  }
  func.func @transform_5(%arg0: i32) -> (i32, i32) {
    %c0_i32 = arith.constant 0 : i32
    %c0_i32_0 = arith.constant 0 : i32
    %c0_i32_1 = arith.constant 0 : i32
    return %c0_i32, %c0_i32_0 : i32, i32
  }
  func.func @transform_6(%arg0: i32) -> (i32, i32) {
    %c0_i32 = arith.constant 0 : i32
    %c0_i32_0 = arith.constant 0 : i32
    %c0_i32_1 = arith.constant 0 : i32
    return %c0_i32, %c0_i32_0 : i32, i32
  }
  func.func @transform_7(%arg0: i32) -> (i32, i32) {
    %c0_i32 = arith.constant 0 : i32
    %c0_i32_0 = arith.constant 0 : i32
    %c0_i32_1 = arith.constant 0 : i32
    return %c0_i32, %c0_i32_0 : i32, i32
  }
  func.func @transform_8(%arg0: i32) -> (i32, i32) {
    %c0_i32 = arith.constant 0 : i32
    %c0_i32_0 = arith.constant 0 : i32
    %c0_i32_1 = arith.constant 0 : i32
    return %c0_i32, %c0_i32_0 : i32, i32
  }
  func.func @transform_9(%arg0: i32) -> (i32, i32, i32) {
    %c0_i32 = arith.constant 0 : i32
    %c0_i32_0 = arith.constant 0 : i32
    %c0_i32_1 = arith.constant 0 : i32
    return %arg0, %c0_i32, %c0_i32_0 : i32, i32, i32
  }
}

</mosaic_0001>

<llo_original>
// kernel: lstm_model_forward.1
$region0: #{lstm_model_forward.1}
  #allocation0 [shape = 'u32[]', space=smem, size = 0x4, offset = 0x4, fixed_abs, tag = 'smem constant byte address 0x4 - core index']
  #allocation1 [shape = 'u32[144,128]{1,0:T(1,128)}', space=vmem, size = 0x12000, scoped, tag = 'internal scratch']
  #allocation2 [shape = 'f32[2,8,32]{2,1,0:T(8,128)}', space=vmem, size = 0x2000, scoped, tag = 'scratch operand']
  #allocation3 [shape = 'f32[2,8,128]{2,1,0:T(8,128)}', space=vmem, size = 0x2000, scoped, tag = 'scratch operand']
  %s0 = inlined_call_operand.vmem [shape: f32[2,8,16], index: 0, kind: input, shape index: {}]
  %s1 = inlined_call_operand.hbm [shape: bf16[16,128], index: 1, kind: input, shape index: {}]
  %s2 = inlined_call_operand.hbm [shape: bf16[32,128], index: 2, kind: input, shape index: {}]
  %s3 = inlined_call_operand.vmem [shape: f32[1,128], index: 3, kind: input, shape index: {}]
  %s4 = inlined_call_operand.hbm [shape: bf16[32,128], index: 4, kind: input, shape index: {}]
  %s5 = inlined_call_operand.hbm [shape: bf16[32,128], index: 5, kind: input, shape index: {}]
  %s6 = inlined_call_operand.vmem [shape: f32[1,128], index: 6, kind: input, shape index: {}]
  %s7 = inlined_call_operand.vmem [shape: bf16[32,4], index: 7, kind: input, shape index: {}]
  %s8 = inlined_call_operand.vmem [shape: f32[1,4], index: 8, kind: input, shape index: {}]
  %s9 = inlined_call_operand.vmem [shape: f32[2,8,4], index: 9, kind: output, shape index: {}]
  %s10 = sld [smem:[#allocation0]]
  $region62: #{lstm_model_forward.1} parent=0
    _
  %s12 = ssub.s32 1, %s10
  %s13 = scalar_select 0, %s12, %s10
  $region1: #{lstm_model_forward.1} parent=0
    #allocation4 [shape = 'u8[4096]{0}', space=vmem, size = 0x1000, scoped, tag = 'input window, operand 1, single buffered']
    #allocation5 [shape = 's32[1]{0}', space=sflag, size = 0x4, scoped, tag = 'scoped memory for lstm_model_forward.1']
    #allocation6 [shape = 'u8[8192]{0}', space=vmem, size = 0x2000, scoped, tag = 'input window, operand 2, single buffered']
    #allocation7 [shape = 's32[1]{0}', space=sflag, size = 0x4, scoped, tag = 'scoped memory for lstm_model_forward.1']
    #allocation8 [shape = 'u8[8192]{0}', space=vmem, size = 0x2000, scoped, tag = 'input window, operand 4, single buffered']
    #allocation9 [shape = 'u8[8192]{0}', space=vmem, size = 0x2000, scoped, tag = 'input window, operand 5, single buffered']
    #allocation10 [shape = 's32[1]{0}', space=sflag, size = 0x4, scoped, tag = 'scoped memory for lstm_model_forward.1']
    %14 = vsyncpa [#allocation5], 0
    %15 = vsyncpa [#allocation7], 0
    %16 = vsyncpa [#allocation10], 0
    // Predicated region
    $region2: #{lstm_model_forward.1} parent=1 // pred_check
      _
    $region3: #{lstm_model_forward.1} parent=1 // pred_check_branch
      %18 = sbr.rel (0) target = $region5
    $region4: #{lstm_model_forward.1} parent=1 // pred_region
      _
    $region5: #{lstm_model_forward.1} parent=1 // pred_fallthru
      _
    // Predicated region
    $region6: #{lstm_model_forward.1} parent=1 // pred_check
      _
    $region7: #{lstm_model_forward.1} parent=1 // pred_check_branch
      %20 = sbr.rel (0) target = $region9
    $region8: #{lstm_model_forward.1} parent=1 // pred_region
      %s22 = ssub.s32 128, 128
      %23 = vsyncadd [#allocation5], %s22
      %s24 = sshll.u32 [#allocation4], 4
      %s25 = int_to_ptr.vmem [resolvable:$true] %s24
      %30 = dma.hbm_to_vmem [thread:$0]  %s1, 128, %s25, [#allocation5], 64, 64, 4
    $region9: #{lstm_model_forward.1} parent=1 // pred_fallthru
      _
    // Predicated region
    $region10: #{lstm_model_forward.1} parent=1 // pred_check
      _
    $region11: #{lstm_model_forward.1} parent=1 // pred_check_branch
      %32 = sbr.rel (0) target = $region13
    $region12: #{lstm_model_forward.1} parent=1 // pred_region
      %s34 = ssub.s32 256, 256
      %35 = vsyncadd [#allocation7], %s34
      %s36 = sshll.u32 [#allocation6], 4
      %s37 = int_to_ptr.vmem [resolvable:$true] %s36
      %42 = dma.hbm_to_vmem [thread:$0]  %s2, 256, %s37, [#allocation7], 64, 64, 4
    $region13: #{lstm_model_forward.1} parent=1 // pred_fallthru
      _
    // Predicated region
    $region14: #{lstm_model_forward.1} parent=1 // pred_check
      _
    $region15: #{lstm_model_forward.1} parent=1 // pred_check_branch
      %44 = sbr.rel (0) target = $region17
    $region16: #{lstm_model_forward.1} parent=1 // pred_region
      _
    $region17: #{lstm_model_forward.1} parent=1 // pred_fallthru
      _
    // Predicated region
    $region18: #{lstm_model_forward.1} parent=1 // pred_check
      _
    $region19: #{lstm_model_forward.1} parent=1 // pred_check_branch
      %46 = sbr.rel (0) target = $region21
    $region20: #{lstm_model_forward.1} parent=1 // pred_region
      %s48 = ssub.s32 256, 256
      %49 = vsyncadd [#allocation7], %s48
      %s50 = sshll.u32 [#allocation8], 4
      %s51 = int_to_ptr.vmem [resolvable:$true] %s50
      %56 = dma.hbm_to_vmem [thread:$0]  %s4, 256, %s51, [#allocation7], 64, 64, 4
    $region21: #{lstm_model_forward.1} parent=1 // pred_fallthru
      _
    // Predicated region
    $region22: #{lstm_model_forward.1} parent=1 // pred_check
      _
    $region23: #{lstm_model_forward.1} parent=1 // pred_check_branch
      %58 = sbr.rel (0) target = $region25
    $region24: #{lstm_model_forward.1} parent=1 // pred_region
      %s60 = ssub.s32 256, 256
      %61 = vsyncadd [#allocation10], %s60
      %s62 = sshll.u32 [#allocation9], 4
      %s63 = int_to_ptr.vmem [resolvable:$true] %s62
      %68 = dma.hbm_to_vmem [thread:$0]  %s5, 256, %s63, [#allocation10], 64, 64, 4
    $region25: #{lstm_model_forward.1} parent=1 // pred_fallthru
      _
    // Predicated region
    $region26: #{lstm_model_forward.1} parent=1 // pred_check
      _
    $region27: #{lstm_model_forward.1} parent=1 // pred_check_branch
      %70 = sbr.rel (0) target = $region29
    $region28: #{lstm_model_forward.1} parent=1 // pred_region
      _
    $region29: #{lstm_model_forward.1} parent=1 // pred_fallthru
      _
    // Predicated region
    $region30: #{lstm_model_forward.1} parent=1 // pred_check
      _
    $region31: #{lstm_model_forward.1} parent=1 // pred_check_branch
      %72 = sbr.rel (0) target = $region33
    $region32: #{lstm_model_forward.1} parent=1 // pred_region
      _
    $region33: #{lstm_model_forward.1} parent=1 // pred_fallthru
      _
    // Predicated region
    $region34: #{lstm_model_forward.1} parent=1 // pred_check
      _
    $region35: #{lstm_model_forward.1} parent=1 // pred_check_branch
      %74 = sbr.rel (0) target = $region37
    $region36: #{lstm_model_forward.1} parent=1 // pred_region
      _
    $region37: #{lstm_model_forward.1} parent=1 // pred_fallthru
      _
    // Predicated region
    $region38: #{lstm_model_forward.1} parent=1 // pred_check
      _
    $region39: #{lstm_model_forward.1} parent=1 // pred_check_branch
      %76 = sbr.rel (0) target = $region41
    $region40: #{lstm_model_forward.1} parent=1 // pred_region
      %77 = dma.done [#allocation5], 128
    $region41: #{lstm_model_forward.1} parent=1 // pred_fallthru
      _
    // Predicated region
    $region42: #{lstm_model_forward.1} parent=1 // pred_check
      _
    $region43: #{lstm_model_forward.1} parent=1 // pred_check_branch
      %79 = sbr.rel (0) target = $region45
    $region44: #{lstm_model_forward.1} parent=1 // pred_region
      %80 = dma.done [#allocation7], 256
    $region45: #{lstm_model_forward.1} parent=1 // pred_fallthru
      _
    // Predicated region
    $region46: #{lstm_model_forward.1} parent=1 // pred_check
      _
    $region47: #{lstm_model_forward.1} parent=1 // pred_check_branch
      %82 = sbr.rel (0) target = $region49
    $region48: #{lstm_model_forward.1} parent=1 // pred_region
      %83 = dma.done [#allocation7], 256
    $region49: #{lstm_model_forward.1} parent=1 // pred_fallthru
      _
    // Predicated region
    $region50: #{lstm_model_forward.1} parent=1 // pred_check
      _
    $region51: #{lstm_model_forward.1} parent=1 // pred_check_branch
      %85 = sbr.rel (0) target = $region53
    $region52: #{lstm_model_forward.1} parent=1 // pred_region
      %86 = dma.done [#allocation10], 256
    $region53: #{lstm_model_forward.1} parent=1 // pred_fallthru
      _
    %v88 = vld [vmem:[#allocation4] sm:$0xf]
    %v89 = vld [vmem:[#allocation4 + $0x4] sm:$0xf]
    %v90 = vld [vmem:[#allocation6] sm:$0xf]
    %v91 = vld [vmem:[#allocation6 + $0x4] sm:$0xf]
    %v92 = vld [vmem:[#allocation6 + $0x8] sm:$0xf]
    %v93 = vld [vmem:[#allocation6 + $0xc] sm:$0xf]
    %v94 = vld [vmem:[%s3] sm:$0x1]
    %v95 = vld [vmem:[%s0] sm:$0xff]
    %v96 = vld [vmem:[%s0 + $0x8] sm:$0xff]
    %v97 = vpack.c.bf16 %v96, %v95
    %v99 = vlaneseq
    %v100 = vshrl.u32 %v99, 7
    %v101 = vsub.s32 0, %v100
    %v102 = vrot.slane %v94, %v101
    %v106 = vunpack.c.l.b16 %v88
    %v107 = vunpack.c.l.b16 %v89
    %v108 = vpack.c.b16 %v107, %v106
    %vm110 = vcmask 130048
    %v112 = vsel %vm110, %v97, 0
    %114 = vmatprep.subr.bf16.mxu0 0
    %115 = vmatpush1.bf16.msra.mxu0 0
    %116 = vmatprep.subr.bf16.mxu0 0
    %117 = vmatpush1.bf16.msra.mxu0 0
    %118 = vmatprep.subr.bf16.mxu0 0
    %119 = vmatpush1.bf16.msra.mxu0 0
    %120 = vmatprep.subr.bf16.mxu0 0
    %121 = vmatpush1.bf16.msra.mxu0 0
    %122 = vmatprep.subr.bf16.mxu0 0
    %123 = vmatpush1.bf16.msra.mxu0 0
    %124 = vmatprep.subr.bf16.mxu0 0
    %125 = vmatpush1.bf16.msra.mxu0 0
    %126 = vmatprep.subr.bf16.mxu0 0
    %127 = vmatpush1.bf16.msra.mxu0 0
    %128 = vmatprep.subr.bf16.mxu0 0
    %129 = vmatpush1.bf16.msra.mxu0 %v108
    %130 = vmatprep.subr.bf16.mxu0 0
    %131 = vmatpush2.bf16.msra.mxu0 0
    %132 = vmatprep.subr.bf16.mxu0 0
    %133 = vmatpush2.bf16.msra.mxu0 0
    %134 = vmatprep.subr.bf16.mxu0 0
    %135 = vmatpush2.bf16.msra.mxu0 0
    %136 = vmatprep.subr.bf16.mxu0 0
    %137 = vmatpush2.bf16.msra.mxu0 0
    %138 = vmatprep.subr.bf16.mxu0 0
    %139 = vmatpush2.bf16.msra.mxu0 0
    %140 = vmatprep.subr.bf16.mxu0 0
    %141 = vmatpush2.bf16.msra.mxu0 0
    %142 = vmatprep.subr.bf16.mxu0 0
    %143 = vmatpush2.bf16.msra.mxu0 0
    %144 = vmatprep.subr.bf16.mxu0 0
    %145 = vmatpush2.bf16.msra.mxu0 0
    %146 = vmatprep.mubr.bf16.mxu0 0
    %147 = vmatmul.mubr.bf16.gmra.mxu0 %v112
    %v148 = vpop.f32.mrf.mxu0
    %v149 = vadd.f32 %v102, %v148
    %v150 = vpop.f32.mrf.mxu0
    %v151 = vpop.f32.mrf.mxu0
    %v152 = vadd.f32 %v102, %v151
    %v153 = vpop.f32.mrf.mxu0
    %154 = vdwg.mxu0
    %155 = vst [vmem:[#allocation3] sm:$0xff] %v149
    %156 = vst [vmem:[#allocation3 + $0x8] sm:$0xff] %v152
    %v157 = vld [vmem:[#allocation3] sm:$0x1]
    %v158 = vld [vmem:[#allocation3 + $0x8] sm:$0x1]
    %v163 = vunpack.c.l.b16 %v90
    %v164 = vunpack.c.l.b16 %v91
    %v165 = vunpack.c.l.b16 %v92
    %v166 = vunpack.c.l.b16 %v93
    %v167 = vpack.c.b16 %v164, %v163
    %v168 = vpack.c.b16 %v166, %v165
    %vm171 = vcmask 261120
    %v173 = vsel %vm171, 0, 0
    %175 = vmatprep.subr.bf16.mxu0 0
    %176 = vmatpush1.bf16.msra.mxu0 0
    %177 = vmatprep.subr.bf16.mxu0 0
    %178 = vmatpush1.bf16.msra.mxu0 0
    %179 = vmatprep.subr.bf16.mxu0 0
    %180 = vmatpush1.bf16.msra.mxu0 0
    %181 = vmatprep.subr.bf16.mxu0 0
    %182 = vmatpush1.bf16.msra.mxu0 0
    %183 = vmatprep.subr.bf16.mxu0 0
    %184 = vmatpush1.bf16.msra.mxu0 0
    %185 = vmatprep.subr.bf16.mxu0 0
    %186 = vmatpush1.bf16.msra.mxu0 0
    %187 = vmatprep.subr.bf16.mxu0 0
    %188 = vmatpush1.bf16.msra.mxu0 %v168
    %189 = vmatprep.subr.bf16.mxu0 0
    %190 = vmatpush1.bf16.msra.mxu0 %v167
    %191 = vmatprep.subr.bf16.mxu0 0
    %192 = vmatpush2.bf16.msra.mxu0 0
    %193 = vmatprep.subr.bf16.mxu0 0
    %194 = vmatpush2.bf16.msra.mxu0 0
    %195 = vmatprep.subr.bf16.mxu0 0
    %196 = vmatpush2.bf16.msra.mxu0 0
    %197 = vmatprep.subr.bf16.mxu0 0
    %198 = vmatpush2.bf16.msra.mxu0 0
    %199 = vmatprep.subr.bf16.mxu0 0
    %200 = vmatpush2.bf16.msra.mxu0 0
    %201 = vmatprep.subr.bf16.mxu0 0
    %202 = vmatpush2.bf16.msra.mxu0 0
    %203 = vmatprep.subr.bf16.mxu0 0
    %204 = vmatpush2.bf16.msra.mxu0 0
    %205 = vmatprep.subr.bf16.mxu0 0
    %206 = vmatpush2.bf16.msra.mxu0 0
    %207 = vmatprep.mubr.bf16.mxu0 0
    %208 = vmatmul.mubr.bf16.gmra.mxu0 %v173
    %v209 = vpop.f32.mrf.mxu0
    %v210 = vadd.f32 0.0, %v209
    %v211 = vpop.f32.mrf.mxu0
    %v212 = vpop.f32.mrf.mxu0
    %v213 = vpop.f32.mrf.mxu0
    %214 = vdwg.mxu0
    %v216 = vrot.slane %v210, 1
    %v219 = vadd.f32 %v157, %v210
    %v220 = vadd.f32 %v158, %v216
    %v221 = vxor.u32 %v219, 2147483648
    %v222 = vxor.u32 %v220, 2147483648
    %v223 = vmul.f32 %v221, 1.442695
    %v224 = vpow.pop %v223
    %v225 = vmul.f32 %v222, 1.442695
    %v226 = vpow.pop %v225
    %v227 = vadd.f32 %v224, 1.0
    %v228 = vadd.f32 %v226, 1.0
    %v229 = vrcp.pop %v227
    %v230 = vmul.f32 1.0, %v229
    %v231 = vrcp.pop %v228
    %v232 = vmul.f32 1.0, %v231
    %v233 = vtanh.pop %v219
    %v234 = vtanh.pop %v220
    %v235 = vmul.f32 %v230, 0.0
    %v236 = vmul.f32 %v232, 0.0
    %239 = vrot.lane.b32.xlu0 %v233, 32
    %v240 = vpop.permute.xlu0 %239
    %241 = vrot.lane.b32.xlu0 %v234, 32
    %v242 = vpop.permute.xlu0 %241
    %v245 = vmul.f32 %v230, %v240
    %v246 = vmul.f32 %v232, %v242
    %249 = vrot.lane.b32.xlu0 %v245, 32
    %v250 = vpop.permute.xlu0 %249
    %251 = vrot.lane.b32.xlu0 %v246, 32
    %v252 = vpop.permute.xlu0 %251
    %v255 = vadd.f32 %v235, %v250
    %v256 = vadd.f32 %v236, %v252
    %v257 = vtanh.pop %v255
    %v258 = vtanh.pop %v256
    %261 = vrot.lane.b32.xlu0 %v257, 32
    %v262 = vpop.permute.xlu0 %261
    %263 = vrot.lane.b32.xlu0 %v258, 32
    %v264 = vpop.permute.xlu0 %263
    %v267 = vmul.f32 %v230, %v262
    %v268 = vmul.f32 %v232, %v264
    %271 = vrot.lane.b32.xlu0 %v267, 64
    %v272 = vpop.permute.xlu0 %271
    %273 = vrot.lane.b32.xlu0 %v268, 64
    %v274 = vpop.permute.xlu0 %273
    %vm277 = vcmask 253952
    %278 = vst.msk [vmem:[#allocation2] sm:$0x1] %vm277, %v272
    %279 = vst.msk [vmem:[#allocation2 + $0x8] sm:$0x1] %vm277, %v274
    %v280 = vld [vmem:[#allocation3 + $0x1] sm:$0x1]
    %v281 = vld [vmem:[#allocation3 + $0x9] sm:$0x1]
    %v282 = vpack.c.bf16 %v267, %v267
    %v283 = vpack.c.bf16 %v268, %v268
    %v286 = vunpack.c.l.b16 %v282
    %v287 = vunpack.c.l.b16 %v283
    %v288 = vrot.slane %v287, 7
    %vm289 = vcmask 1041409
    %v290 = vsel %vm289, %v288, %v286
    %v291 = vpack.c.b16 %v290, %v290
    %292 = vrot.lane.b32.xlu0 %v291, 64
    %v293 = vpop.permute.xlu0 %292
    %v295 = vsel %vm171, %v293, 0
    %297 = vmatprep.subr.bf16.mxu0 0
    %298 = vmatpush1.bf16.msra.mxu0 0
    %299 = vmatprep.subr.bf16.mxu0 0
    %300 = vmatpush1.bf16.msra.mxu0 0
    %301 = vmatprep.subr.bf16.mxu0 0
    %302 = vmatpush1.bf16.msra.mxu0 0
    %303 = vmatprep.subr.bf16.mxu0 0
    %304 = vmatpush1.bf16.msra.mxu0 0
    %305 = vmatprep.subr.bf16.mxu0 0
    %306 = vmatpush1.bf16.msra.mxu0 0
    %307 = vmatprep.subr.bf16.mxu0 0
    %308 = vmatpush1.bf16.msra.mxu0 0
    %309 = vmatprep.subr.bf16.mxu0 0
    %310 = vmatpush1.bf16.msra.mxu0 %v168
    %311 = vmatprep.subr.bf16.mxu0 0
    %312 = vmatpush1.bf16.msra.mxu0 %v167
    %313 = vmatprep.subr.bf16.mxu0 0
    %314 = vmatpush2.bf16.msra.mxu0 0
    %315 = vmatprep.subr.bf16.mxu0 0
    %316 = vmatpush2.bf16.msra.mxu0 0
    %317 = vmatprep.subr.bf16.mxu0 0
    %318 = vmatpush2.bf16.msra.mxu0 0
    %319 = vmatprep.subr.bf16.mxu0 0
    %320 = vmatpush2.bf16.msra.mxu0 0
    %321 = vmatprep.subr.bf16.mxu0 0
    %322 = vmatpush2.bf16.msra.mxu0 0
    %323 = vmatprep.subr.bf16.mxu0 0
    %324 = vmatpush2.bf16.msra.mxu0 0
    %325 = vmatprep.subr.bf16.mxu0 0
    %326 = vmatpush2.bf16.msra.mxu0 0
    %327 = vmatprep.subr.bf16.mxu0 0
    %328 = vmatpush2.bf16.msra.mxu0 0
    %329 = vmatprep.mubr.bf16.mxu0 0
    %330 = vmatmul.mubr.bf16.gmra.mxu0 %v295
    %v331 = vpop.f32.mrf.mxu0
    %v332 = vadd.f32 0.0, %v331
    %v333 = vpop.f32.mrf.mxu0
    %v334 = vpop.f32.mrf.mxu0
    %v335 = vpop.f32.mrf.mxu0
    %336 = vdwg.mxu0
    %v338 = vrot.slane %v332, 1
    %v341 = vadd.f32 %v280, %v332
    %v342 = vadd.f32 %v281, %v338
    %v343 = vxor.u32 %v341, 2147483648
    %v344 = vxor.u32 %v342, 2147483648
    %v345 = vmul.f32 %v343, 1.442695
    %v346 = vpow.pop %v345
    %v347 = vmul.f32 %v344, 1.442695
    %v348 = vpow.pop %v347
    %v349 = vadd.f32 %v346, 1.0
    %v350 = vadd.f32 %v348, 1.0
    %v351 = vrcp.pop %v349
    %v352 = vmul.f32 1.0, %v351
    %v353 = vrcp.pop %v350
    %v354 = vmul.f32 1.0, %v353
    %v355 = vtanh.pop %v341
    %v356 = vtanh.pop %v342
    %v357 = vmul.f32 %v352, %v255
    %v358 = vmul.f32 %v354, %v256
    %361 = vrot.lane.b32.xlu0 %v355, 32
    %v362 = vpop.permute.xlu0 %361
    %363 = vrot.lane.b32.xlu0 %v356, 32
    %v364 = vpop.permute.xlu0 %363
    %v367 = vmul.f32 %v352, %v362
    %v368 = vmul.f32 %v354, %v364
    %371 = vrot.lane.b32.xlu0 %v367, 32
    %v372 = vpop.permute.xlu0 %371
    %373 = vrot.lane.b32.xlu0 %v368, 32
    %v374 = vpop.permute.xlu0 %373
    %v377 = vadd.f32 %v357, %v372
    %v378 = vadd.f32 %v358, %v374
    %v379 = vtanh.pop %v377
    %v380 = vtanh.pop %v378
    %383 = vrot.lane.b32.xlu0 %v379, 32
    %v384 = vpop.permute.xlu0 %383
    %385 = vrot.lane.b32.xlu0 %v380, 32
    %v386 = vpop.permute.xlu0 %385
    %v389 = vmul.f32 %v352, %v384
    %v390 = vmul.f32 %v354, %v386
    %393 = vrot.lane.b32.xlu0 %v389, 64
    %v394 = vpop.permute.xlu0 %393
    %395 = vrot.lane.b32.xlu0 %v390, 64
    %v396 = vpop.permute.xlu0 %395
    %399 = vst.msk [vmem:[#allocation2 + $0x1] sm:$0x1] %vm277, %v394
    %400 = vst.msk [vmem:[#allocation2 + $0x9] sm:$0x1] %vm277, %v396
    %v401 = vld [vmem:[#allocation3 + $0x2] sm:$0x1]
    %v402 = vld [vmem:[#allocation3 + $0xa] sm:$0x1]
    %v403 = vpack.c.bf16 %v389, %v389
    %v404 = vpack.c.bf16 %v390, %v390
    %v407 = vunpack.c.l.b16 %v403
    %v408 = vunpack.c.l.b16 %v404
    %v409 = vrot.slane %v408, 7
    %v410 = vsel %vm289, %v409, %v407
    %v411 = vpack.c.b16 %v410, %v410
    %412 = vrot.lane.b32.xlu0 %v411, 64
    %v413 = vpop.permute.xlu0 %412
    %v415 = vsel %vm171, %v413, 0
    %417 = vmatprep.subr.bf16.mxu0 0
    %418 = vmatpush1.bf16.msra.mxu0 0
    %419 = vmatprep.subr.bf16.mxu0 0
    %420 = vmatpush1.bf16.msra.mxu0 0
    %421 = vmatprep.subr.bf16.mxu0 0
    %422 = vmatpush1.bf16.msra.mxu0 0
    %423 = vmatprep.subr.bf16.mxu0 0
    %424 = vmatpush1.bf16.msra.mxu0 0
    %425 = vmatprep.subr.bf16.mxu0 0
    %426 = vmatpush1.bf16.msra.mxu0 0
    %427 = vmatprep.subr.bf16.mxu0 0
    %428 = vmatpush1.bf16.msra.mxu0 0
    %429 = vmatprep.subr.bf16.mxu0 0
    %430 = vmatpush1.bf16.msra.mxu0 %v168
    %431 = vmatprep.subr.bf16.mxu0 0
    %432 = vmatpush1.bf16.msra.mxu0 %v167
    %433 = vmatprep.subr.bf16.mxu0 0
    %434 = vmatpush2.bf16.msra.mxu0 0
    %435 = vmatprep.subr.bf16.mxu0 0
    %436 = vmatpush2.bf16.msra.mxu0 0
    %437 = vmatprep.subr.bf16.mxu0 0
    %438 = vmatpush2.bf16.msra.mxu0 0
    %439 = vmatprep.subr.bf16.mxu0 0
    %440 = vmatpush2.bf16.msra.mxu0 0
    %441 = vmatprep.subr.bf16.mxu0 0
    %442 = vmatpush2.bf16.msra.mxu0 0
    %443 = vmatprep.subr.bf16.mxu0 0
    %444 = vmatpush2.bf16.msra.mxu0 0
    %445 = vmatprep.subr.bf16.mxu0 0
    %446 = vmatpush2.bf16.msra.mxu0 0
    %447 = vmatprep.subr.bf16.mxu0 0
    %448 = vmatpush2.bf16.msra.mxu0 0
    %449 = vmatprep.mubr.bf16.mxu0 0
    %450 = vmatmul.mubr.bf16.gmra.mxu0 %v415
    %v451 = vpop.f32.mrf.mxu0
    %v452 = vadd.f32 0.0, %v451
    %v453 = vpop.f32.mrf.mxu0
    %v454 = vpop.f32.mrf.mxu0
    %v455 = vpop.f32.mrf.mxu0
    %456 = vdwg.mxu0
    %v458 = vrot.slane %v452, 1
    %v461 = vadd.f32 %v401, %v452
    %v462 = vadd.f32 %v402, %v458
    %v463 = vxor.u32 %v461, 2147483648
    %v464 = vxor.u32 %v462, 2147483648
    %v465 = vmul.f32 %v463, 1.442695
    %v466 = vpow.pop %v465
    %v467 = vmul.f32 %v464, 1.442695
    %v468 = vpow.pop %v467
    %v469 = vadd.f32 %v466, 1.0
    %v470 = vadd.f32 %v468, 1.0
    %v471 = vrcp.pop %v469
    %v472 = vmul.f32 1.0, %v471
    %v473 = vrcp.pop %v470
    %v474 = vmul.f32 1.0, %v473
    %v475 = vtanh.pop %v461
    %v476 = vtanh.pop %v462
    %v477 = vmul.f32 %v472, %v377
    %v478 = vmul.f32 %v474, %v378
    %481 = vrot.lane.b32.xlu0 %v475, 32
    %v482 = vpop.permute.xlu0 %481
    %483 = vrot.lane.b32.xlu0 %v476, 32
    %v484 = vpop.permute.xlu0 %483
    %v487 = vmul.f32 %v472, %v482
    %v488 = vmul.f32 %v474, %v484
    %491 = vrot.lane.b32.xlu0 %v487, 32
    %v492 = vpop.permute.xlu0 %491
    %493 = vrot.lane.b32.xlu0 %v488, 32
    %v494 = vpop.permute.xlu0 %493
    %v497 = vadd.f32 %v477, %v492
    %v498 = vadd.f32 %v478, %v494
    %v499 = vtanh.pop %v497
    %v500 = vtanh.pop %v498
    %503 = vrot.lane.b32.xlu0 %v499, 32
    %v504 = vpop.permute.xlu0 %503
    %505 = vrot.lane.b32.xlu0 %v500, 32
    %v506 = vpop.permute.xlu0 %505
    %v509 = vmul.f32 %v472, %v504
    %v510 = vmul.f32 %v474, %v506
    %513 = vrot.lane.b32.xlu0 %v509, 64
    %v514 = vpop.permute.xlu0 %513
    %515 = vrot.lane.b32.xlu0 %v510, 64
    %v516 = vpop.permute.xlu0 %515
    %519 = vst.msk [vmem:[#allocation2 + $0x2] sm:$0x1] %vm277, %v514
    %520 = vst.msk [vmem:[#allocation2 + $0xa] sm:$0x1] %vm277, %v516
    %v521 = vld [vmem:[#allocation3 + $0x3] sm:$0x1]
    %v522 = vld [vmem:[#allocation3 + $0xb] sm:$0x1]
    %v523 = vpack.c.bf16 %v509, %v509
    %v524 = vpack.c.bf16 %v510, %v510
    %v527 = vunpack.c.l.b16 %v523
    %v528 = vunpack.c.l.b16 %v524
    %v529 = vrot.slane %v528, 7
    %v530 = vsel %vm289, %v529, %v527
    %v531 = vpack.c.b16 %v530, %v530
    %532 = vrot.lane.b32.xlu0 %v531, 64
    %v533 = vpop.permute.xlu0 %532
    %v535 = vsel %vm171, %v533, 0
    %537 = vmatprep.subr.bf16.mxu0 0
    %538 = vmatpush1.bf16.msra.mxu0 0
    %539 = vmatprep.subr.bf16.mxu0 0
    %540 = vmatpush1.bf16.msra.mxu0 0
    %541 = vmatprep.subr.bf16.mxu0 0
    %542 = vmatpush1.bf16.msra.mxu0 0
    %543 = vmatprep.subr.bf16.mxu0 0
    %544 = vmatpush1.bf16.msra.mxu0 0
    %545 = vmatprep.subr.bf16.mxu0 0
    %546 = vmatpush1.bf16.msra.mxu0 0
    %547 = vmatprep.subr.bf16.mxu0 0
    %548 = vmatpush1.bf16.msra.mxu0 0
    %549 = vmatprep.subr.bf16.mxu0 0
    %550 = vmatpush1.bf16.msra.mxu0 %v168
    %551 = vmatprep.subr.bf16.mxu0 0
    %552 = vmatpush1.bf16.msra.mxu0 %v167
    %553 = vmatprep.subr.bf16.mxu0 0
    %554 = vmatpush2.bf16.msra.mxu0 0
    %555 = vmatprep.subr.bf16.mxu0 0
    %556 = vmatpush2.bf16.msra.mxu0 0
    %557 = vmatprep.subr.bf16.mxu0 0
    %558 = vmatpush2.bf16.msra.mxu0 0
    %559 = vmatprep.subr.bf16.mxu0 0
    %560 = vmatpush2.bf16.msra.mxu0 0
    %561 = vmatprep.subr.bf16.mxu0 0
    %562 = vmatpush2.bf16.msra.mxu0 0
    %563 = vmatprep.subr.bf16.mxu0 0
    %564 = vmatpush2.bf16.msra.mxu0 0
    %565 = vmatprep.subr.bf16.mxu0 0
    %566 = vmatpush2.bf16.msra.mxu0 0
    %567 = vmatprep.subr.bf16.mxu0 0
    %568 = vmatpush2.bf16.msra.mxu0 0
    %569 = vmatprep.mubr.bf16.mxu0 0
    %570 = vmatmul.mubr.bf16.gmra.mxu0 %v535
    %v571 = vpop.f32.mrf.mxu0
    %v572 = vadd.f32 0.0, %v571
    %v573 = vpop.f32.mrf.mxu0
    %v574 = vpop.f32.mrf.mxu0
    %v575 = vpop.f32.mrf.mxu0
    %576 = vdwg.mxu0
    %v578 = vrot.slane %v572, 1
    %v581 = vadd.f32 %v521, %v572
    %v582 = vadd.f32 %v522, %v578
    %v583 = vxor.u32 %v581, 2147483648
    %v584 = vxor.u32 %v582, 2147483648
    %v585 = vmul.f32 %v583, 1.442695
    %v586 = vpow.pop %v585
    %v587 = vmul.f32 %v584, 1.442695
    %v588 = vpow.pop %v587
    %v589 = vadd.f32 %v586, 1.0
    %v590 = vadd.f32 %v588, 1.0
    %v591 = vrcp.pop %v589
    %v592 = vmul.f32 1.0, %v591
    %v593 = vrcp.pop %v590
    %v594 = vmul.f32 1.0, %v593
    %v595 = vtanh.pop %v581
    %v596 = vtanh.pop %v582
    %v597 = vmul.f32 %v592, %v497
    %v598 = vmul.f32 %v594, %v498
    %601 = vrot.lane.b32.xlu0 %v595, 32
    %v602 = vpop.permute.xlu0 %601
    %603 = vrot.lane.b32.xlu0 %v596, 32
    %v604 = vpop.permute.xlu0 %603
    %v607 = vmul.f32 %v592, %v602
    %v608 = vmul.f32 %v594, %v604
    %611 = vrot.lane.b32.xlu0 %v607, 32
    %v612 = vpop.permute.xlu0 %611
    %613 = vrot.lane.b32.xlu0 %v608, 32
    %v614 = vpop.permute.xlu0 %613
    %v617 = vadd.f32 %v597, %v612
    %v618 = vadd.f32 %v598, %v614
    %v619 = vtanh.pop %v617
    %v620 = vtanh.pop %v618
    %623 = vrot.lane.b32.xlu0 %v619, 32
    %v624 = vpop.permute.xlu0 %623
    %625 = vrot.lane.b32.xlu0 %v620, 32
    %v626 = vpop.permute.xlu0 %625
    %v629 = vmul.f32 %v592, %v624
    %v630 = vmul.f32 %v594, %v626
    %633 = vrot.lane.b32.xlu0 %v629, 64
    %v634 = vpop.permute.xlu0 %633
    %635 = vrot.lane.b32.xlu0 %v630, 64
    %v636 = vpop.permute.xlu0 %635
    %639 = vst.msk [vmem:[#allocation2 + $0x3] sm:$0x1] %vm277, %v634
    %640 = vst.msk [vmem:[#allocation2 + $0xb] sm:$0x1] %vm277, %v636
    %v641 = vld [vmem:[#allocation3 + $0x4] sm:$0x1]
    %v642 = vld [vmem:[#allocation3 + $0xc] sm:$0x1]
    %v643 = vpack.c.bf16 %v629, %v629
    %v644 = vpack.c.bf16 %v630, %v630
    %v647 = vunpack.c.l.b16 %v643
    %v648 = vunpack.c.l.b16 %v644
    %v649 = vrot.slane %v648, 7
    %v650 = vsel %vm289, %v649, %v647
    %v651 = vpack.c.b16 %v650, %v650
    %652 = vrot.lane.b32.xlu0 %v651, 64
    %v653 = vpop.permute.xlu0 %652
    %v655 = vsel %vm171, %v653, 0
    %657 = vmatprep.subr.bf16.mxu0 0
    %658 = vmatpush1.bf16.msra.mxu0 0
    %659 = vmatprep.subr.bf16.mxu0 0
    %660 = vmatpush1.bf16.msra.mxu0 0
    %661 = vmatprep.subr.bf16.mxu0 0
    %662 = vmatpush1.bf16.msra.mxu0 0
    %663 = vmatprep.subr.bf16.mxu0 0
    %664 = vmatpush1.bf16.msra.mxu0 0
    %665 = vmatprep.subr.bf16.mxu0 0
    %666 = vmatpush1.bf16.msra.mxu0 0
    %667 = vmatprep.subr.bf16.mxu0 0
    %668 = vmatpush1.bf16.msra.mxu0 0
    %669 = vmatprep.subr.bf16.mxu0 0
    %670 = vmatpush1.bf16.msra.mxu0 %v168
    %671 = vmatprep.subr.bf16.mxu0 0
    %672 = vmatpush1.bf16.msra.mxu0 %v167
    %673 = vmatprep.subr.bf16.mxu0 0
    %674 = vmatpush2.bf16.msra.mxu0 0
    %675 = vmatprep.subr.bf16.mxu0 0
    %676 = vmatpush2.bf16.msra.mxu0 0
    %677 = vmatprep.subr.bf16.mxu0 0
    %678 = vmatpush2.bf16.msra.mxu0 0
    %679 = vmatprep.subr.bf16.mxu0 0
    %680 = vmatpush2.bf16.msra.mxu0 0
    %681 = vmatprep.subr.bf16.mxu0 0
    %682 = vmatpush2.bf16.msra.mxu0 0
    %683 = vmatprep.subr.bf16.mxu0 0
    %684 = vmatpush2.bf16.msra.mxu0 0
    %685 = vmatprep.subr.bf16.mxu0 0
    %686 = vmatpush2.bf16.msra.mxu0 0
    %687 = vmatprep.subr.bf16.mxu0 0
    %688 = vmatpush2.bf16.msra.mxu0 0
    %689 = vmatprep.mubr.bf16.mxu0 0
    %690 = vmatmul.mubr.bf16.gmra.mxu0 %v655
    %v691 = vpop.f32.mrf.mxu0
    %v692 = vadd.f32 0.0, %v691
    %v693 = vpop.f32.mrf.mxu0
    %v694 = vpop.f32.mrf.mxu0
    %v695 = vpop.f32.mrf.mxu0
    %696 = vdwg.mxu0
    %v698 = vrot.slane %v692, 1
    %v701 = vadd.f32 %v641, %v692
    %v702 = vadd.f32 %v642, %v698
    %v703 = vxor.u32 %v701, 2147483648
    %v704 = vxor.u32 %v702, 2147483648
    %v705 = vmul.f32 %v703, 1.442695
    %v706 = vpow.pop %v705
    %v707 = vmul.f32 %v704, 1.442695
    %v708 = vpow.pop %v707
    %v709 = vadd.f32 %v706, 1.0
    %v710 = vadd.f32 %v708, 1.0
    %v711 = vrcp.pop %v709
    %v712 = vmul.f32 1.0, %v711
    %v713 = vrcp.pop %v710
    %v714 = vmul.f32 1.0, %v713
    %v715 = vtanh.pop %v701
    %v716 = vtanh.pop %v702
    %v717 = vmul.f32 %v712, %v617
    %v718 = vmul.f32 %v714, %v618
    %721 = vrot.lane.b32.xlu0 %v715, 32
    %v722 = vpop.permute.xlu0 %721
    %723 = vrot.lane.b32.xlu0 %v716, 32
    %v724 = vpop.permute.xlu0 %723
    %v727 = vmul.f32 %v712, %v722
    %v728 = vmul.f32 %v714, %v724
    %731 = vrot.lane.b32.xlu0 %v727, 32
    %v732 = vpop.permute.xlu0 %731
    %733 = vrot.lane.b32.xlu0 %v728, 32
    %v734 = vpop.permute.xlu0 %733
    %v737 = vadd.f32 %v717, %v732
    %v738 = vadd.f32 %v718, %v734
    %v739 = vtanh.pop %v737
    %v740 = vtanh.pop %v738
    %743 = vrot.lane.b32.xlu0 %v739, 32
    %v744 = vpop.permute.xlu0 %743
    %745 = vrot.lane.b32.xlu0 %v740, 32
    %v746 = vpop.permute.xlu0 %745
    %v749 = vmul.f32 %v712, %v744
    %v750 = vmul.f32 %v714, %v746
    %753 = vrot.lane.b32.xlu0 %v749, 64
    %v754 = vpop.permute.xlu0 %753
    %755 = vrot.lane.b32.xlu0 %v750, 64
    %v756 = vpop.permute.xlu0 %755
    %759 = vst.msk [vmem:[#allocation2 + $0x4] sm:$0x1] %vm277, %v754
    %760 = vst.msk [vmem:[#allocation2 + $0xc] sm:$0x1] %vm277, %v756
    %v761 = vld [vmem:[#allocation3 + $0x5] sm:$0x1]
    %v762 = vld [vmem:[#allocation3 + $0xd] sm:$0x1]
    %v763 = vpack.c.bf16 %v749, %v749
    %v764 = vpack.c.bf16 %v750, %v750
    %v767 = vunpack.c.l.b16 %v763
    %v768 = vunpack.c.l.b16 %v764
    %v769 = vrot.slane %v768, 7
    %v770 = vsel %vm289, %v769, %v767
    %v771 = vpack.c.b16 %v770, %v770
    %772 = vrot.lane.b32.xlu0 %v771, 64
    %v773 = vpop.permute.xlu0 %772
    %v775 = vsel %vm171, %v773, 0
    %777 = vmatprep.subr.bf16.mxu0 0
    %778 = vmatpush1.bf16.msra.mxu0 0
    %779 = vmatprep.subr.bf16.mxu0 0
    %780 = vmatpush1.bf16.msra.mxu0 0
    %781 = vmatprep.subr.bf16.mxu0 0
    %782 = vmatpush1.bf16.msra.mxu0 0
    %783 = vmatprep.subr.bf16.mxu0 0
    %784 = vmatpush1.bf16.msra.mxu0 0
    %785 = vmatprep.subr.bf16.mxu0 0
    %786 = vmatpush1.bf16.msra.mxu0 0
    %787 = vmatprep.subr.bf16.mxu0 0
    %788 = vmatpush1.bf16.msra.mxu0 0
    %789 = vmatprep.subr.bf16.mxu0 0
    %790 = vmatpush1.bf16.msra.mxu0 %v168
    %791 = vmatprep.subr.bf16.mxu0 0
    %792 = vmatpush1.bf16.msra.mxu0 %v167
    %793 = vmatprep.subr.bf16.mxu0 0
    %794 = vmatpush2.bf16.msra.mxu0 0
    %795 = vmatprep.subr.bf16.mxu0 0
    %796 = vmatpush2.bf16.msra.mxu0 0
    %797 = vmatprep.subr.bf16.mxu0 0
    %798 = vmatpush2.bf16.msra.mxu0 0
    %799 = vmatprep.subr.bf16.mxu0 0
    %800 = vmatpush2.bf16.msra.mxu0 0
    %801 = vmatprep.subr.bf16.mxu0 0
    %802 = vmatpush2.bf16.msra.mxu0 0
    %803 = vmatprep.subr.bf16.mxu0 0
    %804 = vmatpush2.bf16.msra.mxu0 0
    %805 = vmatprep.subr.bf16.mxu0 0
    %806 = vmatpush2.bf16.msra.mxu0 0
    %807 = vmatprep.subr.bf16.mxu0 0
    %808 = vmatpush2.bf16.msra.mxu0 0
    %809 = vmatprep.mubr.bf16.mxu0 0
    %810 = vmatmul.mubr.bf16.gmra.mxu0 %v775
    %v811 = vpop.f32.mrf.mxu0
    %v812 = vadd.f32 0.0, %v811
    %v813 = vpop.f32.mrf.mxu0
    %v814 = vpop.f32.mrf.mxu0
    %v815 = vpop.f32.mrf.mxu0
    %816 = vdwg.mxu0
    %v818 = vrot.slane %v812, 1
    %v821 = vadd.f32 %v761, %v812
    %v822 = vadd.f32 %v762, %v818
    %v823 = vxor.u32 %v821, 2147483648
    %v824 = vxor.u32 %v822, 2147483648
    %v825 = vmul.f32 %v823, 1.442695
    %v826 = vpow.pop %v825
    %v827 = vmul.f32 %v824, 1.442695
    %v828 = vpow.pop %v827
    %v829 = vadd.f32 %v826, 1.0
    %v830 = vadd.f32 %v828, 1.0
    %v831 = vrcp.pop %v829
    %v832 = vmul.f32 1.0, %v831
    %v833 = vrcp.pop %v830
    %v834 = vmul.f32 1.0, %v833
    %v835 = vtanh.pop %v821
    %v836 = vtanh.pop %v822
    %v837 = vmul.f32 %v832, %v737
    %v838 = vmul.f32 %v834, %v738
    %841 = vrot.lane.b32.xlu0 %v835, 32
    %v842 = vpop.permute.xlu0 %841
    %843 = vrot.lane.b32.xlu0 %v836, 32
    %v844 = vpop.permute.xlu0 %843
    %v847 = vmul.f32 %v832, %v842
    %v848 = vmul.f32 %v834, %v844
    %851 = vrot.lane.b32.xlu0 %v847, 32
    %v852 = vpop.permute.xlu0 %851
    %853 = vrot.lane.b32.xlu0 %v848, 32
    %v854 = vpop.permute.xlu0 %853
    %v857 = vadd.f32 %v837, %v852
    %v858 = vadd.f32 %v838, %v854
    %v859 = vtanh.pop %v857
    %v860 = vtanh.pop %v858
    %863 = vrot.lane.b32.xlu0 %v859, 32
    %v864 = vpop.permute.xlu0 %863
    %865 = vrot.lane.b32.xlu0 %v860, 32
    %v866 = vpop.permute.xlu0 %865
    %v869 = vmul.f32 %v832, %v864
    %v870 = vmul.f32 %v834, %v866
    %873 = vrot.lane.b32.xlu0 %v869, 64
    %v874 = vpop.permute.xlu0 %873
    %875 = vrot.lane.b32.xlu0 %v870, 64
    %v876 = vpop.permute.xlu0 %875
    %879 = vst.msk [vmem:[#allocation2 + $0x5] sm:$0x1] %vm277, %v874
    %880 = vst.msk [vmem:[#allocation2 + $0xd] sm:$0x1] %vm277, %v876
    %v881 = vld [vmem:[#allocation3 + $0x6] sm:$0x1]
    %v882 = vld [vmem:[#allocation3 + $0xe] sm:$0x1]
    %v883 = vpack.c.bf16 %v869, %v869
    %v884 = vpack.c.bf16 %v870, %v870
    %v887 = vunpack.c.l.b16 %v883
    %v888 = vunpack.c.l.b16 %v884
    %v889 = vrot.slane %v888, 7
    %v890 = vsel %vm289, %v889, %v887
    %v891 = vpack.c.b16 %v890, %v890
    %892 = vrot.lane.b32.xlu0 %v891, 64
    %v893 = vpop.permute.xlu0 %892
    %v895 = vsel %vm171, %v893, 0
    %897 = vmatprep.subr.bf16.mxu0 0
    %898 = vmatpush1.bf16.msra.mxu0 0
    %899 = vmatprep.subr.bf16.mxu0 0
    %900 = vmatpush1.bf16.msra.mxu0 0
    %901 = vmatprep.subr.bf16.mxu0 0
    %902 = vmatpush1.bf16.msra.mxu0 0
    %903 = vmatprep.subr.bf16.mxu0 0
    %904 = vmatpush1.bf16.msra.mxu0 0
    %905 = vmatprep.subr.bf16.mxu0 0
    %906 = vmatpush1.bf16.msra.mxu0 0
    %907 = vmatprep.subr.bf16.mxu0 0
    %908 = vmatpush1.bf16.msra.mxu0 0
    %909 = vmatprep.subr.bf16.mxu0 0
    %910 = vmatpush1.bf16.msra.mxu0 %v168
    %911 = vmatprep.subr.bf16.mxu0 0
    %912 = vmatpush1.bf16.msra.mxu0 %v167
    %913 = vmatprep.subr.bf16.mxu0 0
    %914 = vmatpush2.bf16.msra.mxu0 0
    %915 = vmatprep.subr.bf16.mxu0 0
    %916 = vmatpush2.bf16.msra.mxu0 0
    %917 = vmatprep.subr.bf16.mxu0 0
    %918 = vmatpush2.bf16.msra.mxu0 0
    %919 = vmatprep.subr.bf16.mxu0 0
    %920 = vmatpush2.bf16.msra.mxu0 0
    %921 = vmatprep.subr.bf16.mxu0 0
    %922 = vmatpush2.bf16.msra.mxu0 0
    %923 = vmatprep.subr.bf16.mxu0 0
    %924 = vmatpush2.bf16.msra.mxu0 0
    %925 = vmatprep.subr.bf16.mxu0 0
    %926 = vmatpush2.bf16.msra.mxu0 0
    %927 = vmatprep.subr.bf16.mxu0 0
    %928 = vmatpush2.bf16.msra.mxu0 0
    %929 = vmatprep.mubr.bf16.mxu0 0
    %930 = vmatmul.mubr.bf16.gmra.mxu0 %v895
    %v931 = vpop.f32.mrf.mxu0
    %v932 = vadd.f32 0.0, %v931
    %v933 = vpop.f32.mrf.mxu0
    %v934 = vpop.f32.mrf.mxu0
    %v935 = vpop.f32.mrf.mxu0
    %936 = vdwg.mxu0
    %v938 = vrot.slane %v932, 1
    %v941 = vadd.f32 %v881, %v932
    %v942 = vadd.f32 %v882, %v938
    %v943 = vxor.u32 %v941, 2147483648
    %v944 = vxor.u32 %v942, 2147483648
    %v945 = vmul.f32 %v943, 1.442695
    %v946 = vpow.pop %v945
    %v947 = vmul.f32 %v944, 1.442695
    %v948 = vpow.pop %v947
    %v949 = vadd.f32 %v946, 1.0
    %v950 = vadd.f32 %v948, 1.0
    %v951 = vrcp.pop %v949
    %v952 = vmul.f32 1.0, %v951
    %v953 = vrcp.pop %v950
    %v954 = vmul.f32 1.0, %v953
    %v955 = vtanh.pop %v941
    %v956 = vtanh.pop %v942
    %v957 = vmul.f32 %v952, %v857
    %v958 = vmul.f32 %v954, %v858
    %961 = vrot.lane.b32.xlu0 %v955, 32
    %v962 = vpop.permute.xlu0 %961
    %963 = vrot.lane.b32.xlu0 %v956, 32
    %v964 = vpop.permute.xlu0 %963
    %v967 = vmul.f32 %v952, %v962
    %v968 = vmul.f32 %v954, %v964
    %971 = vrot.lane.b32.xlu0 %v967, 32
    %v972 = vpop.permute.xlu0 %971
    %973 = vrot.lane.b32.xlu0 %v968, 32
    %v974 = vpop.permute.xlu0 %973
    %v977 = vadd.f32 %v957, %v972
    %v978 = vadd.f32 %v958, %v974
    %v979 = vtanh.pop %v977
    %v980 = vtanh.pop %v978
    %983 = vrot.lane.b32.xlu0 %v979, 32
    %v984 = vpop.permute.xlu0 %983
    %985 = vrot.lane.b32.xlu0 %v980, 32
    %v986 = vpop.permute.xlu0 %985
    %v989 = vmul.f32 %v952, %v984
    %v990 = vmul.f32 %v954, %v986
    %993 = vrot.lane.b32.xlu0 %v989, 64
    %v994 = vpop.permute.xlu0 %993
    %995 = vrot.lane.b32.xlu0 %v990, 64
    %v996 = vpop.permute.xlu0 %995
    %999 = vst.msk [vmem:[#allocation2 + $0x6] sm:$0x1] %vm277, %v994
    %1000 = vst.msk [vmem:[#allocation2 + $0xe] sm:$0x1] %vm277, %v996
    %v1001 = vld [vmem:[#allocation3 + $0x7] sm:$0x1]
    %v1002 = vld [vmem:[#allocation3 + $0xf] sm:$0x1]
    %v1003 = vpack.c.bf16 %v989, %v989
    %v1004 = vpack.c.bf16 %v990, %v990
    %v1007 = vunpack.c.l.b16 %v1003
    %v1008 = vunpack.c.l.b16 %v1004
    %v1009 = vrot.slane %v1008, 7
    %v1010 = vsel %vm289, %v1009, %v1007
    %v1011 = vpack.c.b16 %v1010, %v1010
    %1012 = vrot.lane.b32.xlu0 %v1011, 64
    %v1013 = vpop.permute.xlu0 %1012
    %v1015 = vsel %vm171, %v1013, 0
    %1017 = vmatprep.subr.bf16.mxu0 0
    %1018 = vmatpush1.bf16.msra.mxu0 0
    %1019 = vmatprep.subr.bf16.mxu0 0
    %1020 = vmatpush1.bf16.msra.mxu0 0
    %1021 = vmatprep.subr.bf16.mxu0 0
    %1022 = vmatpush1.bf16.msra.mxu0 0
    %1023 = vmatprep.subr.bf16.mxu0 0
    %1024 = vmatpush1.bf16.msra.mxu0 0
    %1025 = vmatprep.subr.bf16.mxu0 0
    %1026 = vmatpush1.bf16.msra.mxu0 0
    %1027 = vmatprep.subr.bf16.mxu0 0
    %1028 = vmatpush1.bf16.msra.mxu0 0
    %1029 = vmatprep.subr.bf16.mxu0 0
    %1030 = vmatpush1.bf16.msra.mxu0 %v168
    %1031 = vmatprep.subr.bf16.mxu0 0
    %1032 = vmatpush1.bf16.msra.mxu0 %v167
    %1033 = vmatprep.subr.bf16.mxu0 0
    %1034 = vmatpush2.bf16.msra.mxu0 0
    %1035 = vmatprep.subr.bf16.mxu0 0
    %1036 = vmatpush2.bf16.msra.mxu0 0
    %1037 = vmatprep.subr.bf16.mxu0 0
    %1038 = vmatpush2.bf16.msra.mxu0 0
    %1039 = vmatprep.subr.bf16.mxu0 0
    %1040 = vmatpush2.bf16.msra.mxu0 0
    %1041 = vmatprep.subr.bf16.mxu0 0
    %1042 = vmatpush2.bf16.msra.mxu0 0
    %1043 = vmatprep.subr.bf16.mxu0 0
    %1044 = vmatpush2.bf16.msra.mxu0 0
    %1045 = vmatprep.subr.bf16.mxu0 0
    %1046 = vmatpush2.bf16.msra.mxu0 0
    %1047 = vmatprep.subr.bf16.mxu0 0
    %1048 = vmatpush2.bf16.msra.mxu0 0
    %1049 = vmatprep.mubr.bf16.mxu0 0
    %1050 = vmatmul.mubr.bf16.gmra.mxu0 %v1015
    %v1051 = vpop.f32.mrf.mxu0
    %v1052 = vadd.f32 0.0, %v1051
    %v1053 = vpop.f32.mrf.mxu0
    %v1054 = vpop.f32.mrf.mxu0
    %v1055 = vpop.f32.mrf.mxu0
    %1056 = vdwg.mxu0
    %v1058 = vrot.slane %v1052, 1
    %v1061 = vadd.f32 %v1001, %v1052
    %v1062 = vadd.f32 %v1002, %v1058
    %v1063 = vxor.u32 %v1061, 2147483648
    %v1064 = vxor.u32 %v1062, 2147483648
    %v1065 = vmul.f32 %v1063, 1.442695
    %v1066 = vpow.pop %v1065
    %v1067 = vmul.f32 %v1064, 1.442695
    %v1068 = vpow.pop %v1067
    %v1069 = vadd.f32 %v1066, 1.0
    %v1070 = vadd.f32 %v1068, 1.0
    %v1071 = vrcp.pop %v1069
    %v1072 = vmul.f32 1.0, %v1071
    %v1073 = vrcp.pop %v1070
    %v1074 = vmul.f32 1.0, %v1073
    %v1075 = vtanh.pop %v1061
    %v1076 = vtanh.pop %v1062
    %v1077 = vmul.f32 %v1072, %v977
    %v1078 = vmul.f32 %v1074, %v978
    %1081 = vrot.lane.b32.xlu0 %v1075, 32
    %v1082 = vpop.permute.xlu0 %1081
    %1083 = vrot.lane.b32.xlu0 %v1076, 32
    %v1084 = vpop.permute.xlu0 %1083
    %v1087 = vmul.f32 %v1072, %v1082
    %v1088 = vmul.f32 %v1074, %v1084
    %1091 = vrot.lane.b32.xlu0 %v1087, 32
    %v1092 = vpop.permute.xlu0 %1091
    %1093 = vrot.lane.b32.xlu0 %v1088, 32
    %v1094 = vpop.permute.xlu0 %1093
    %v1097 = vadd.f32 %v1077, %v1092
    %v1098 = vadd.f32 %v1078, %v1094
    %v1099 = vtanh.pop %v1097
    %v1100 = vtanh.pop %v1098
    %1103 = vrot.lane.b32.xlu0 %v1099, 32
    %v1104 = vpop.permute.xlu0 %1103
    %1105 = vrot.lane.b32.xlu0 %v1100, 32
    %v1106 = vpop.permute.xlu0 %1105
    %v1109 = vmul.f32 %v1072, %v1104
    %v1110 = vmul.f32 %v1074, %v1106
    %1113 = vrot.lane.b32.xlu0 %v1109, 64
    %v1114 = vpop.permute.xlu0 %1113
    %1115 = vrot.lane.b32.xlu0 %v1110, 64
    %v1116 = vpop.permute.xlu0 %1115
    %1119 = vst.msk [vmem:[#allocation2 + $0x7] sm:$0x1] %vm277, %v1114
    %1120 = vst.msk [vmem:[#allocation2 + $0xf] sm:$0x1] %vm277, %v1116
    %v1121 = vld [vmem:[#allocation8] sm:$0xf]
    %v1122 = vld [vmem:[#allocation8 + $0x4] sm:$0xf]
    %v1123 = vld [vmem:[#allocation8 + $0x8] sm:$0xf]
    %v1124 = vld [vmem:[#allocation8 + $0xc] sm:$0xf]
    %v1125 = vld [vmem:[#allocation9] sm:$0xf]
    %v1126 = vld [vmem:[#allocation9 + $0x4] sm:$0xf]
    %v1127 = vld [vmem:[#allocation9 + $0x8] sm:$0xf]
    %v1128 = vld [vmem:[#allocation9 + $0xc] sm:$0xf]
    %v1129 = vld [vmem:[%s6] sm:$0x1]
    %v1130 = vld [vmem:[#allocation2] sm:$0xff]
    %v1131 = vld [vmem:[#allocation2 + $0x8] sm:$0xff]
    %v1132 = vpack.c.bf16 %v1131, %v1130
    %v1134 = vlaneseq
    %v1135 = vshrl.u32 %v1134, 7
    %v1136 = vsub.s32 0, %v1135
    %v1137 = vrot.slane %v1129, %v1136
    %v1143 = vunpack.c.l.b16 %v1121
    %v1144 = vunpack.c.l.b16 %v1122
    %v1145 = vunpack.c.l.b16 %v1123
    %v1146 = vunpack.c.l.b16 %v1124
    %v1147 = vpack.c.b16 %v1144, %v1143
    %v1148 = vpack.c.b16 %v1146, %v1145
    %v1152 = vsel %vm171, %v1132, 0
    %1154 = vmatprep.subr.bf16.mxu0 0
    %1155 = vmatpush1.bf16.msra.mxu0 0
    %1156 = vmatprep.subr.bf16.mxu0 0
    %1157 = vmatpush1.bf16.msra.mxu0 0
    %1158 = vmatprep.subr.bf16.mxu0 0
    %1159 = vmatpush1.bf16.msra.mxu0 0
    %1160 = vmatprep.subr.bf16.mxu0 0
    %1161 = vmatpush1.bf16.msra.mxu0 0
    %1162 = vmatprep.subr.bf16.mxu0 0
    %1163 = vmatpush1.bf16.msra.mxu0 0
    %1164 = vmatprep.subr.bf16.mxu0 0
    %1165 = vmatpush1.bf16.msra.mxu0 0
    %1166 = vmatprep.subr.bf16.mxu0 0
    %1167 = vmatpush1.bf16.msra.mxu0 %v1148
    %1168 = vmatprep.subr.bf16.mxu0 0
    %1169 = vmatpush1.bf16.msra.mxu0 %v1147
    %1170 = vmatprep.subr.bf16.mxu0 0
    %1171 = vmatpush2.bf16.msra.mxu0 0
    %1172 = vmatprep.subr.bf16.mxu0 0
    %1173 = vmatpush2.bf16.msra.mxu0 0
    %1174 = vmatprep.subr.bf16.mxu0 0
    %1175 = vmatpush2.bf16.msra.mxu0 0
    %1176 = vmatprep.subr.bf16.mxu0 0
    %1177 = vmatpush2.bf16.msra.mxu0 0
    %1178 = vmatprep.subr.bf16.mxu0 0
    %1179 = vmatpush2.bf16.msra.mxu0 0
    %1180 = vmatprep.subr.bf16.mxu0 0
    %1181 = vmatpush2.bf16.msra.mxu0 0
    %1182 = vmatprep.subr.bf16.mxu0 0
    %1183 = vmatpush2.bf16.msra.mxu0 0
    %1184 = vmatprep.subr.bf16.mxu0 0
    %1185 = vmatpush2.bf16.msra.mxu0 0
    %1186 = vmatprep.mubr.bf16.mxu0 0
    %1187 = vmatmul.mubr.bf16.gmra.mxu0 %v1152
    %v1188 = vpop.f32.mrf.mxu0
    %v1189 = vadd.f32 %v1137, %v1188
    %v1190 = vpop.f32.mrf.mxu0
    %v1191 = vpop.f32.mrf.mxu0
    %v1192 = vadd.f32 %v1137, %v1191
    %v1193 = vpop.f32.mrf.mxu0
    %1194 = vdwg.mxu0
    %1195 = vst [vmem:[#allocation3] sm:$0xff] %v1189
    %1196 = vst [vmem:[#allocation3 + $0x8] sm:$0xff] %v1192
    %v1197 = vld [vmem:[#allocation3] sm:$0x1]
    %v1198 = vld [vmem:[#allocation3 + $0x8] sm:$0x1]
    %v1203 = vunpack.c.l.b16 %v1125
    %v1204 = vunpack.c.l.b16 %v1126
    %v1205 = vunpack.c.l.b16 %v1127
    %v1206 = vunpack.c.l.b16 %v1128
    %v1207 = vpack.c.b16 %v1204, %v1203
    %v1208 = vpack.c.b16 %v1206, %v1205
    %1211 = vmatprep.subr.bf16.mxu0 0
    %1212 = vmatpush1.bf16.msra.mxu0 0
    %1213 = vmatprep.subr.bf16.mxu0 0
    %1214 = vmatpush1.bf16.msra.mxu0 0
    %1215 = vmatprep.subr.bf16.mxu0 0
    %1216 = vmatpush1.bf16.msra.mxu0 0
    %1217 = vmatprep.subr.bf16.mxu0 0
    %1218 = vmatpush1.bf16.msra.mxu0 0
    %1219 = vmatprep.subr.bf16.mxu0 0
    %1220 = vmatpush1.bf16.msra.mxu0 0
    %1221 = vmatprep.subr.bf16.mxu0 0
    %1222 = vmatpush1.bf16.msra.mxu0 0
    %1223 = vmatprep.subr.bf16.mxu0 0
    %1224 = vmatpush1.bf16.msra.mxu0 %v1208
    %1225 = vmatprep.subr.bf16.mxu0 0
    %1226 = vmatpush1.bf16.msra.mxu0 %v1207
    %1227 = vmatprep.subr.bf16.mxu0 0
    %1228 = vmatpush2.bf16.msra.mxu0 0
    %1229 = vmatprep.subr.bf16.mxu0 0
    %1230 = vmatpush2.bf16.msra.mxu0 0
    %1231 = vmatprep.subr.bf16.mxu0 0
    %1232 = vmatpush2.bf16.msra.mxu0 0
    %1233 = vmatprep.subr.bf16.mxu0 0
    %1234 = vmatpush2.bf16.msra.mxu0 0
    %1235 = vmatprep.subr.bf16.mxu0 0
    %1236 = vmatpush2.bf16.msra.mxu0 0
    %1237 = vmatprep.subr.bf16.mxu0 0
    %1238 = vmatpush2.bf16.msra.mxu0 0
    %1239 = vmatprep.subr.bf16.mxu0 0
    %1240 = vmatpush2.bf16.msra.mxu0 0
    %1241 = vmatprep.subr.bf16.mxu0 0
    %1242 = vmatpush2.bf16.msra.mxu0 0
    %1243 = vmatprep.mubr.bf16.mxu0 0
    %1244 = vmatmul.mubr.bf16.gmra.mxu0 %v173
    %v1245 = vpop.f32.mrf.mxu0
    %v1246 = vadd.f32 0.0, %v1245
    %v1247 = vpop.f32.mrf.mxu0
    %v1248 = vpop.f32.mrf.mxu0
    %v1249 = vpop.f32.mrf.mxu0
    %1250 = vdwg.mxu0
    %v1252 = vrot.slane %v1246, 1
    %v1255 = vadd.f32 %v1197, %v1246
    %v1256 = vadd.f32 %v1198, %v1252
    %v1257 = vxor.u32 %v1255, 2147483648
    %v1258 = vxor.u32 %v1256, 2147483648
    %v1259 = vmul.f32 %v1257, 1.442695
    %v1260 = vpow.pop %v1259
    %v1261 = vmul.f32 %v1258, 1.442695
    %v1262 = vpow.pop %v1261
    %v1263 = vadd.f32 %v1260, 1.0
    %v1264 = vadd.f32 %v1262, 1.0
    %v1265 = vrcp.pop %v1263
    %v1266 = vmul.f32 1.0, %v1265
    %v1267 = vrcp.pop %v1264
    %v1268 = vmul.f32 1.0, %v1267
    %v1269 = vtanh.pop %v1255
    %v1270 = vtanh.pop %v1256
    %v1271 = vmul.f32 %v1266, 0.0
    %v1272 = vmul.f32 %v1268, 0.0
    %1275 = vrot.lane.b32.xlu0 %v1269, 32
    %v1276 = vpop.permute.xlu0 %1275
    %1277 = vrot.lane.b32.xlu0 %v1270, 32
    %v1278 = vpop.permute.xlu0 %1277
    %v1281 = vmul.f32 %v1266, %v1276
    %v1282 = vmul.f32 %v1268, %v1278
    %1285 = vrot.lane.b32.xlu0 %v1281, 32
    %v1286 = vpop.permute.xlu0 %1285
    %1287 = vrot.lane.b32.xlu0 %v1282, 32
    %v1288 = vpop.permute.xlu0 %1287
    %v1291 = vadd.f32 %v1271, %v1286
    %v1292 = vadd.f32 %v1272, %v1288
    %v1293 = vtanh.pop %v1291
    %v1294 = vtanh.pop %v1292
    %1297 = vrot.lane.b32.xlu0 %v1293, 32
    %v1298 = vpop.permute.xlu0 %1297
    %1299 = vrot.lane.b32.xlu0 %v1294, 32
    %v1300 = vpop.permute.xlu0 %1299
    %v1303 = vmul.f32 %v1266, %v1298
    %v1304 = vmul.f32 %v1268, %v1300
    %1307 = vrot.lane.b32.xlu0 %v1303, 64
    %v1308 = vpop.permute.xlu0 %1307
    %1309 = vrot.lane.b32.xlu0 %v1304, 64
    %v1310 = vpop.permute.xlu0 %1309
    %1313 = vst.msk [vmem:[#allocation2] sm:$0x1] %vm277, %v1308
    %1314 = vst.msk [vmem:[#allocation2 + $0x8] sm:$0x1] %vm277, %v1310
    %v1315 = vld [vmem:[#allocation3 + $0x1] sm:$0x1]
    %v1316 = vld [vmem:[#allocation3 + $0x9] sm:$0x1]
    %v1317 = vpack.c.bf16 %v1303, %v1303
    %v1318 = vpack.c.bf16 %v1304, %v1304
    %v1321 = vunpack.c.l.b16 %v1317
    %v1322 = vunpack.c.l.b16 %v1318
    %v1323 = vrot.slane %v1322, 7
    %v1324 = vsel %vm289, %v1323, %v1321
    %v1325 = vpack.c.b16 %v1324, %v1324
    %1326 = vrot.lane.b32.xlu0 %v1325, 64
    %v1327 = vpop.permute.xlu0 %1326
    %v1329 = vsel %vm171, %v1327, 0
    %1331 = vmatprep.subr.bf16.mxu0 0
    %1332 = vmatpush1.bf16.msra.mxu0 0
    %1333 = vmatprep.subr.bf16.mxu0 0
    %1334 = vmatpush1.bf16.msra.mxu0 0
    %1335 = vmatprep.subr.bf16.mxu0 0
    %1336 = vmatpush1.bf16.msra.mxu0 0
    %1337 = vmatprep.subr.bf16.mxu0 0
    %1338 = vmatpush1.bf16.msra.mxu0 0
    %1339 = vmatprep.subr.bf16.mxu0 0
    %1340 = vmatpush1.bf16.msra.mxu0 0
    %1341 = vmatprep.subr.bf16.mxu0 0
    %1342 = vmatpush1.bf16.msra.mxu0 0
    %1343 = vmatprep.subr.bf16.mxu0 0
    %1344 = vmatpush1.bf16.msra.mxu0 %v1208
    %1345 = vmatprep.subr.bf16.mxu0 0
    %1346 = vmatpush1.bf16.msra.mxu0 %v1207
    %1347 = vmatprep.subr.bf16.mxu0 0
    %1348 = vmatpush2.bf16.msra.mxu0 0
    %1349 = vmatprep.subr.bf16.mxu0 0
    %1350 = vmatpush2.bf16.msra.mxu0 0
    %1351 = vmatprep.subr.bf16.mxu0 0
    %1352 = vmatpush2.bf16.msra.mxu0 0
    %1353 = vmatprep.subr.bf16.mxu0 0
    %1354 = vmatpush2.bf16.msra.mxu0 0
    %1355 = vmatprep.subr.bf16.mxu0 0
    %1356 = vmatpush2.bf16.msra.mxu0 0
    %1357 = vmatprep.subr.bf16.mxu0 0
    %1358 = vmatpush2.bf16.msra.mxu0 0
    %1359 = vmatprep.subr.bf16.mxu0 0
    %1360 = vmatpush2.bf16.msra.mxu0 0
    %1361 = vmatprep.subr.bf16.mxu0 0
    %1362 = vmatpush2.bf16.msra.mxu0 0
    %1363 = vmatprep.mubr.bf16.mxu0 0
    %1364 = vmatmul.mubr.bf16.gmra.mxu0 %v1329
    %v1365 = vpop.f32.mrf.mxu0
    %v1366 = vadd.f32 0.0, %v1365
    %v1367 = vpop.f32.mrf.mxu0
    %v1368 = vpop.f32.mrf.mxu0
    %v1369 = vpop.f32.mrf.mxu0
    %1370 = vdwg.mxu0
    %v1372 = vrot.slane %v1366, 1
    %v1375 = vadd.f32 %v1315, %v1366
    %v1376 = vadd.f32 %v1316, %v1372
    %v1377 = vxor.u32 %v1375, 2147483648
    %v1378 = vxor.u32 %v1376, 2147483648
    %v1379 = vmul.f32 %v1377, 1.442695
    %v1380 = vpow.pop %v1379
    %v1381 = vmul.f32 %v1378, 1.442695
    %v1382 = vpow.pop %v1381
    %v1383 = vadd.f32 %v1380, 1.0
    %v1384 = vadd.f32 %v1382, 1.0
    %v1385 = vrcp.pop %v1383
    %v1386 = vmul.f32 1.0, %v1385
    %v1387 = vrcp.pop %v1384
    %v1388 = vmul.f32 1.0, %v1387
    %v1389 = vtanh.pop %v1375
    %v1390 = vtanh.pop %v1376
    %v1391 = vmul.f32 %v1386, %v1291
    %v1392 = vmul.f32 %v1388, %v1292
    %1395 = vrot.lane.b32.xlu0 %v1389, 32
    %v1396 = vpop.permute.xlu0 %1395
    %1397 = vrot.lane.b32.xlu0 %v1390, 32
    %v1398 = vpop.permute.xlu0 %1397
    %v1401 = vmul.f32 %v1386, %v1396
    %v1402 = vmul.f32 %v1388, %v1398
    %1405 = vrot.lane.b32.xlu0 %v1401, 32
    %v1406 = vpop.permute.xlu0 %1405
    %1407 = vrot.lane.b32.xlu0 %v1402, 32
    %v1408 = vpop.permute.xlu0 %1407
    %v1411 = vadd.f32 %v1391, %v1406
    %v1412 = vadd.f32 %v1392, %v1408
    %v1413 = vtanh.pop %v1411
    %v1414 = vtanh.pop %v1412
    %1417 = vrot.lane.b32.xlu0 %v1413, 32
    %v1418 = vpop.permute.xlu0 %1417
    %1419 = vrot.lane.b32.xlu0 %v1414, 32
    %v1420 = vpop.permute.xlu0 %1419
    %v1423 = vmul.f32 %v1386, %v1418
    %v1424 = vmul.f32 %v1388, %v1420
    %1427 = vrot.lane.b32.xlu0 %v1423, 64
    %v1428 = vpop.permute.xlu0 %1427
    %1429 = vrot.lane.b32.xlu0 %v1424, 64
    %v1430 = vpop.permute.xlu0 %1429
    %1433 = vst.msk [vmem:[#allocation2 + $0x1] sm:$0x1] %vm277, %v1428
    %1434 = vst.msk [vmem:[#allocation2 + $0x9] sm:$0x1] %vm277, %v1430
    %v1435 = vld [vmem:[#allocation3 + $0x2] sm:$0x1]
    %v1436 = vld [vmem:[#allocation3 + $0xa] sm:$0x1]
    %v1437 = vpack.c.bf16 %v1423, %v1423
    %v1438 = vpack.c.bf16 %v1424, %v1424
    %v1441 = vunpack.c.l.b16 %v1437
    %v1442 = vunpack.c.l.b16 %v1438
    %v1443 = vrot.slane %v1442, 7
    %v1444 = vsel %vm289, %v1443, %v1441
    %v1445 = vpack.c.b16 %v1444, %v1444
    %1446 = vrot.lane.b32.xlu0 %v1445, 64
    %v1447 = vpop.permute.xlu0 %1446
    %v1449 = vsel %vm171, %v1447, 0
    %1451 = vmatprep.subr.bf16.mxu0 0
    %1452 = vmatpush1.bf16.msra.mxu0 0
    %1453 = vmatprep.subr.bf16.mxu0 0
    %1454 = vmatpush1.bf16.msra.mxu0 0
    %1455 = vmatprep.subr.bf16.mxu0 0
    %1456 = vmatpush1.bf16.msra.mxu0 0
    %1457 = vmatprep.subr.bf16.mxu0 0
    %1458 = vmatpush1.bf16.msra.mxu0 0
    %1459 = vmatprep.subr.bf16.mxu0 0
    %1460 = vmatpush1.bf16.msra.mxu0 0
    %1461 = vmatprep.subr.bf16.mxu0 0
    %1462 = vmatpush1.bf16.msra.mxu0 0
    %1463 = vmatprep.subr.bf16.mxu0 0
    %1464 = vmatpush1.bf16.msra.mxu0 %v1208
    %1465 = vmatprep.subr.bf16.mxu0 0
    %1466 = vmatpush1.bf16.msra.mxu0 %v1207
    %1467 = vmatprep.subr.bf16.mxu0 0
    %1468 = vmatpush2.bf16.msra.mxu0 0
    %1469 = vmatprep.subr.bf16.mxu0 0
    %1470 = vmatpush2.bf16.msra.mxu0 0
    %1471 = vmatprep.subr.bf16.mxu0 0
    %1472 = vmatpush2.bf16.msra.mxu0 0
    %1473 = vmatprep.subr.bf16.mxu0 0
    %1474 = vmatpush2.bf16.msra.mxu0 0
    %1475 = vmatprep.subr.bf16.mxu0 0
    %1476 = vmatpush2.bf16.msra.mxu0 0
    %1477 = vmatprep.subr.bf16.mxu0 0
    %1478 = vmatpush2.bf16.msra.mxu0 0
    %1479 = vmatprep.subr.bf16.mxu0 0
    %1480 = vmatpush2.bf16.msra.mxu0 0
    %1481 = vmatprep.subr.bf16.mxu0 0
    %1482 = vmatpush2.bf16.msra.mxu0 0
    %1483 = vmatprep.mubr.bf16.mxu0 0
    %1484 = vmatmul.mubr.bf16.gmra.mxu0 %v1449
    %v1485 = vpop.f32.mrf.mxu0
    %v1486 = vadd.f32 0.0, %v1485
    %v1487 = vpop.f32.mrf.mxu0
    %v1488 = vpop.f32.mrf.mxu0
    %v1489 = vpop.f32.mrf.mxu0
    %1490 = vdwg.mxu0
    %v1492 = vrot.slane %v1486, 1
    %v1495 = vadd.f32 %v1435, %v1486
    %v1496 = vadd.f32 %v1436, %v1492
    %v1497 = vxor.u32 %v1495, 2147483648
    %v1498 = vxor.u32 %v1496, 2147483648
    %v1499 = vmul.f32 %v1497, 1.442695
    %v1500 = vpow.pop %v1499
    %v1501 = vmul.f32 %v1498, 1.442695
    %v1502 = vpow.pop %v1501
    %v1503 = vadd.f32 %v1500, 1.0
    %v1504 = vadd.f32 %v1502, 1.0
    %v1505 = vrcp.pop %v1503
    %v1506 = vmul.f32 1.0, %v1505
    %v1507 = vrcp.pop %v1504
    %v1508 = vmul.f32 1.0, %v1507
    %v1509 = vtanh.pop %v1495
    %v1510 = vtanh.pop %v1496
    %v1511 = vmul.f32 %v1506, %v1411
    %v1512 = vmul.f32 %v1508, %v1412
    %1515 = vrot.lane.b32.xlu0 %v1509, 32
    %v1516 = vpop.permute.xlu0 %1515
    %1517 = vrot.lane.b32.xlu0 %v1510, 32
    %v1518 = vpop.permute.xlu0 %1517
    %v1521 = vmul.f32 %v1506, %v1516
    %v1522 = vmul.f32 %v1508, %v1518
    %1525 = vrot.lane.b32.xlu0 %v1521, 32
    %v1526 = vpop.permute.xlu0 %1525
    %1527 = vrot.lane.b32.xlu0 %v1522, 32
    %v1528 = vpop.permute.xlu0 %1527
    %v1531 = vadd.f32 %v1511, %v1526
    %v1532 = vadd.f32 %v1512, %v1528
    %v1533 = vtanh.pop %v1531
    %v1534 = vtanh.pop %v1532
    %1537 = vrot.lane.b32.xlu0 %v1533, 32
    %v1538 = vpop.permute.xlu0 %1537
    %1539 = vrot.lane.b32.xlu0 %v1534, 32
    %v1540 = vpop.permute.xlu0 %1539
    %v1543 = vmul.f32 %v1506, %v1538
    %v1544 = vmul.f32 %v1508, %v1540
    %1547 = vrot.lane.b32.xlu0 %v1543, 64
    %v1548 = vpop.permute.xlu0 %1547
    %1549 = vrot.lane.b32.xlu0 %v1544, 64
    %v1550 = vpop.permute.xlu0 %1549
    %1553 = vst.msk [vmem:[#allocation2 + $0x2] sm:$0x1] %vm277, %v1548
    %1554 = vst.msk [vmem:[#allocation2 + $0xa] sm:$0x1] %vm277, %v1550
    %v1555 = vld [vmem:[#allocation3 + $0x3] sm:$0x1]
    %v1556 = vld [vmem:[#allocation3 + $0xb] sm:$0x1]
    %v1557 = vpack.c.bf16 %v1543, %v1543
    %v1558 = vpack.c.bf16 %v1544, %v1544
    %v1561 = vunpack.c.l.b16 %v1557
    %v1562 = vunpack.c.l.b16 %v1558
    %v1563 = vrot.slane %v1562, 7
    %v1564 = vsel %vm289, %v1563, %v1561
    %v1565 = vpack.c.b16 %v1564, %v1564
    %1566 = vrot.lane.b32.xlu0 %v1565, 64
    %v1567 = vpop.permute.xlu0 %1566
    %v1569 = vsel %vm171, %v1567, 0
    %1571 = vmatprep.subr.bf16.mxu0 0
    %1572 = vmatpush1.bf16.msra.mxu0 0
    %1573 = vmatprep.subr.bf16.mxu0 0
    %1574 = vmatpush1.bf16.msra.mxu0 0
    %1575 = vmatprep.subr.bf16.mxu0 0
    %1576 = vmatpush1.bf16.msra.mxu0 0
    %1577 = vmatprep.subr.bf16.mxu0 0
    %1578 = vmatpush1.bf16.msra.mxu0 0
    %1579 = vmatprep.subr.bf16.mxu0 0
    %1580 = vmatpush1.bf16.msra.mxu0 0
    %1581 = vmatprep.subr.bf16.mxu0 0
    %1582 = vmatpush1.bf16.msra.mxu0 0
    %1583 = vmatprep.subr.bf16.mxu0 0
    %1584 = vmatpush1.bf16.msra.mxu0 %v1208
    %1585 = vmatprep.subr.bf16.mxu0 0
    %1586 = vmatpush1.bf16.msra.mxu0 %v1207
    %1587 = vmatprep.subr.bf16.mxu0 0
    %1588 = vmatpush2.bf16.msra.mxu0 0
    %1589 = vmatprep.subr.bf16.mxu0 0
    %1590 = vmatpush2.bf16.msra.mxu0 0
    %1591 = vmatprep.subr.bf16.mxu0 0
    %1592 = vmatpush2.bf16.msra.mxu0 0
    %1593 = vmatprep.subr.bf16.mxu0 0
    %1594 = vmatpush2.bf16.msra.mxu0 0
    %1595 = vmatprep.subr.bf16.mxu0 0
    %1596 = vmatpush2.bf16.msra.mxu0 0
    %1597 = vmatprep.subr.bf16.mxu0 0
    %1598 = vmatpush2.bf16.msra.mxu0 0
    %1599 = vmatprep.subr.bf16.mxu0 0
    %1600 = vmatpush2.bf16.msra.mxu0 0
    %1601 = vmatprep.subr.bf16.mxu0 0
    %1602 = vmatpush2.bf16.msra.mxu0 0
    %1603 = vmatprep.mubr.bf16.mxu0 0
    %1604 = vmatmul.mubr.bf16.gmra.mxu0 %v1569
    %v1605 = vpop.f32.mrf.mxu0
    %v1606 = vadd.f32 0.0, %v1605
    %v1607 = vpop.f32.mrf.mxu0
    %v1608 = vpop.f32.mrf.mxu0
    %v1609 = vpop.f32.mrf.mxu0
    %1610 = vdwg.mxu0
    %v1612 = vrot.slane %v1606, 1
    %v1615 = vadd.f32 %v1555, %v1606
    %v1616 = vadd.f32 %v1556, %v1612
    %v1617 = vxor.u32 %v1615, 2147483648
    %v1618 = vxor.u32 %v1616, 2147483648
    %v1619 = vmul.f32 %v1617, 1.442695
    %v1620 = vpow.pop %v1619
    %v1621 = vmul.f32 %v1618, 1.442695
    %v1622 = vpow.pop %v1621
    %v1623 = vadd.f32 %v1620, 1.0
    %v1624 = vadd.f32 %v1622, 1.0
    %v1625 = vrcp.pop %v1623
    %v1626 = vmul.f32 1.0, %v1625
    %v1627 = vrcp.pop %v1624
    %v1628 = vmul.f32 1.0, %v1627
    %v1629 = vtanh.pop %v1615
    %v1630 = vtanh.pop %v1616
    %v1631 = vmul.f32 %v1626, %v1531
    %v1632 = vmul.f32 %v1628, %v1532
    %1635 = vrot.lane.b32.xlu0 %v1629, 32
    %v1636 = vpop.permute.xlu0 %1635
    %1637 = vrot.lane.b32.xlu0 %v1630, 32
    %v1638 = vpop.permute.xlu0 %1637
    %v1641 = vmul.f32 %v1626, %v1636
    %v1642 = vmul.f32 %v1628, %v1638
    %1645 = vrot.lane.b32.xlu0 %v1641, 32
    %v1646 = vpop.permute.xlu0 %1645
    %1647 = vrot.lane.b32.xlu0 %v1642, 32
    %v1648 = vpop.permute.xlu0 %1647
    %v1651 = vadd.f32 %v1631, %v1646
    %v1652 = vadd.f32 %v1632, %v1648
    %v1653 = vtanh.pop %v1651
    %v1654 = vtanh.pop %v1652
    %1657 = vrot.lane.b32.xlu0 %v1653, 32
    %v1658 = vpop.permute.xlu0 %1657
    %1659 = vrot.lane.b32.xlu0 %v1654, 32
    %v1660 = vpop.permute.xlu0 %1659
    %v1663 = vmul.f32 %v1626, %v1658
    %v1664 = vmul.f32 %v1628, %v1660
    %1667 = vrot.lane.b32.xlu0 %v1663, 64
    %v1668 = vpop.permute.xlu0 %1667
    %1669 = vrot.lane.b32.xlu0 %v1664, 64
    %v1670 = vpop.permute.xlu0 %1669
    %1673 = vst.msk [vmem:[#allocation2 + $0x3] sm:$0x1] %vm277, %v1668
    %1674 = vst.msk [vmem:[#allocation2 + $0xb] sm:$0x1] %vm277, %v1670
    %v1675 = vld [vmem:[#allocation3 + $0x4] sm:$0x1]
    %v1676 = vld [vmem:[#allocation3 + $0xc] sm:$0x1]
    %v1677 = vpack.c.bf16 %v1663, %v1663
    %v1678 = vpack.c.bf16 %v1664, %v1664
    %v1681 = vunpack.c.l.b16 %v1677
    %v1682 = vunpack.c.l.b16 %v1678
    %v1683 = vrot.slane %v1682, 7
    %v1684 = vsel %vm289, %v1683, %v1681
    %v1685 = vpack.c.b16 %v1684, %v1684
    %1686 = vrot.lane.b32.xlu0 %v1685, 64
    %v1687 = vpop.permute.xlu0 %1686
    %v1689 = vsel %vm171, %v1687, 0
    %1691 = vmatprep.subr.bf16.mxu0 0
    %1692 = vmatpush1.bf16.msra.mxu0 0
    %1693 = vmatprep.subr.bf16.mxu0 0
    %1694 = vmatpush1.bf16.msra.mxu0 0
    %1695 = vmatprep.subr.bf16.mxu0 0
    %1696 = vmatpush1.bf16.msra.mxu0 0
    %1697 = vmatprep.subr.bf16.mxu0 0
    %1698 = vmatpush1.bf16.msra.mxu0 0
    %1699 = vmatprep.subr.bf16.mxu0 0
    %1700 = vmatpush1.bf16.msra.mxu0 0
    %1701 = vmatprep.subr.bf16.mxu0 0
    %1702 = vmatpush1.bf16.msra.mxu0 0
    %1703 = vmatprep.subr.bf16.mxu0 0
    %1704 = vmatpush1.bf16.msra.mxu0 %v1208
    %1705 = vmatprep.subr.bf16.mxu0 0
    %1706 = vmatpush1.bf16.msra.mxu0 %v1207
    %1707 = vmatprep.subr.bf16.mxu0 0
    %1708 = vmatpush2.bf16.msra.mxu0 0
    %1709 = vmatprep.subr.bf16.mxu0 0
    %1710 = vmatpush2.bf16.msra.mxu0 0
    %1711 = vmatprep.subr.bf16.mxu0 0
    %1712 = vmatpush2.bf16.msra.mxu0 0
    %1713 = vmatprep.subr.bf16.mxu0 0
    %1714 = vmatpush2.bf16.msra.mxu0 0
    %1715 = vmatprep.subr.bf16.mxu0 0
    %1716 = vmatpush2.bf16.msra.mxu0 0
    %1717 = vmatprep.subr.bf16.mxu0 0
    %1718 = vmatpush2.bf16.msra.mxu0 0
    %1719 = vmatprep.subr.bf16.mxu0 0
    %1720 = vmatpush2.bf16.msra.mxu0 0
    %1721 = vmatprep.subr.bf16.mxu0 0
    %1722 = vmatpush2.bf16.msra.mxu0 0
    %1723 = vmatprep.mubr.bf16.mxu0 0
    %1724 = vmatmul.mubr.bf16.gmra.mxu0 %v1689
    %v1725 = vpop.f32.mrf.mxu0
    %v1726 = vadd.f32 0.0, %v1725
    %v1727 = vpop.f32.mrf.mxu0
    %v1728 = vpop.f32.mrf.mxu0
    %v1729 = vpop.f32.mrf.mxu0
    %1730 = vdwg.mxu0
    %v1732 = vrot.slane %v1726, 1
    %v1735 = vadd.f32 %v1675, %v1726
    %v1736 = vadd.f32 %v1676, %v1732
    %v1737 = vxor.u32 %v1735, 2147483648
    %v1738 = vxor.u32 %v1736, 2147483648
    %v1739 = vmul.f32 %v1737, 1.442695
    %v1740 = vpow.pop %v1739
    %v1741 = vmul.f32 %v1738, 1.442695
    %v1742 = vpow.pop %v1741
    %v1743 = vadd.f32 %v1740, 1.0
    %v1744 = vadd.f32 %v1742, 1.0
    %v1745 = vrcp.pop %v1743
    %v1746 = vmul.f32 1.0, %v1745
    %v1747 = vrcp.pop %v1744
    %v1748 = vmul.f32 1.0, %v1747
    %v1749 = vtanh.pop %v1735
    %v1750 = vtanh.pop %v1736
    %v1751 = vmul.f32 %v1746, %v1651
    %v1752 = vmul.f32 %v1748, %v1652
    %1755 = vrot.lane.b32.xlu0 %v1749, 32
    %v1756 = vpop.permute.xlu0 %1755
    %1757 = vrot.lane.b32.xlu0 %v1750, 32
    %v1758 = vpop.permute.xlu0 %1757
    %v1761 = vmul.f32 %v1746, %v1756
    %v1762 = vmul.f32 %v1748, %v1758
    %1765 = vrot.lane.b32.xlu0 %v1761, 32
    %v1766 = vpop.permute.xlu0 %1765
    %1767 = vrot.lane.b32.xlu0 %v1762, 32
    %v1768 = vpop.permute.xlu0 %1767
    %v1771 = vadd.f32 %v1751, %v1766
    %v1772 = vadd.f32 %v1752, %v1768
    %v1773 = vtanh.pop %v1771
    %v1774 = vtanh.pop %v1772
    %1777 = vrot.lane.b32.xlu0 %v1773, 32
    %v1778 = vpop.permute.xlu0 %1777
    %1779 = vrot.lane.b32.xlu0 %v1774, 32
    %v1780 = vpop.permute.xlu0 %1779
    %v1783 = vmul.f32 %v1746, %v1778
    %v1784 = vmul.f32 %v1748, %v1780
    %1787 = vrot.lane.b32.xlu0 %v1783, 64
    %v1788 = vpop.permute.xlu0 %1787
    %1789 = vrot.lane.b32.xlu0 %v1784, 64
    %v1790 = vpop.permute.xlu0 %1789
    %1793 = vst.msk [vmem:[#allocation2 + $0x4] sm:$0x1] %vm277, %v1788
    %1794 = vst.msk [vmem:[#allocation2 + $0xc] sm:$0x1] %vm277, %v1790
    %v1795 = vld [vmem:[#allocation3 + $0x5] sm:$0x1]
    %v1796 = vld [vmem:[#allocation3 + $0xd] sm:$0x1]
    %v1797 = vpack.c.bf16 %v1783, %v1783
    %v1798 = vpack.c.bf16 %v1784, %v1784
    %v1801 = vunpack.c.l.b16 %v1797
    %v1802 = vunpack.c.l.b16 %v1798
    %v1803 = vrot.slane %v1802, 7
    %v1804 = vsel %vm289, %v1803, %v1801
    %v1805 = vpack.c.b16 %v1804, %v1804
    %1806 = vrot.lane.b32.xlu0 %v1805, 64
    %v1807 = vpop.permute.xlu0 %1806
    %v1809 = vsel %vm171, %v1807, 0
    %1811 = vmatprep.subr.bf16.mxu0 0
    %1812 = vmatpush1.bf16.msra.mxu0 0
    %1813 = vmatprep.subr.bf16.mxu0 0
    %1814 = vmatpush1.bf16.msra.mxu0 0
    %1815 = vmatprep.subr.bf16.mxu0 0
    %1816 = vmatpush1.bf16.msra.mxu0 0
    %1817 = vmatprep.subr.bf16.mxu0 0
    %1818 = vmatpush1.bf16.msra.mxu0 0
    %1819 = vmatprep.subr.bf16.mxu0 0
    %1820 = vmatpush1.bf16.msra.mxu0 0
    %1821 = vmatprep.subr.bf16.mxu0 0
    %1822 = vmatpush1.bf16.msra.mxu0 0
    %1823 = vmatprep.subr.bf16.mxu0 0
    %1824 = vmatpush1.bf16.msra.mxu0 %v1208
    %1825 = vmatprep.subr.bf16.mxu0 0
    %1826 = vmatpush1.bf16.msra.mxu0 %v1207
    %1827 = vmatprep.subr.bf16.mxu0 0
    %1828 = vmatpush2.bf16.msra.mxu0 0
    %1829 = vmatprep.subr.bf16.mxu0 0
    %1830 = vmatpush2.bf16.msra.mxu0 0
    %1831 = vmatprep.subr.bf16.mxu0 0
    %1832 = vmatpush2.bf16.msra.mxu0 0
    %1833 = vmatprep.subr.bf16.mxu0 0
    %1834 = vmatpush2.bf16.msra.mxu0 0
    %1835 = vmatprep.subr.bf16.mxu0 0
    %1836 = vmatpush2.bf16.msra.mxu0 0
    %1837 = vmatprep.subr.bf16.mxu0 0
    %1838 = vmatpush2.bf16.msra.mxu0 0
    %1839 = vmatprep.subr.bf16.mxu0 0
    %1840 = vmatpush2.bf16.msra.mxu0 0
    %1841 = vmatprep.subr.bf16.mxu0 0
    %1842 = vmatpush2.bf16.msra.mxu0 0
    %1843 = vmatprep.mubr.bf16.mxu0 0
    %1844 = vmatmul.mubr.bf16.gmra.mxu0 %v1809
    %v1845 = vpop.f32.mrf.mxu0
    %v1846 = vadd.f32 0.0, %v1845
    %v1847 = vpop.f32.mrf.mxu0
    %v1848 = vpop.f32.mrf.mxu0
    %v1849 = vpop.f32.mrf.mxu0
    %1850 = vdwg.mxu0
    %v1852 = vrot.slane %v1846, 1
    %v1855 = vadd.f32 %v1795, %v1846
    %v1856 = vadd.f32 %v1796, %v1852
    %v1857 = vxor.u32 %v1855, 2147483648
    %v1858 = vxor.u32 %v1856, 2147483648
    %v1859 = vmul.f32 %v1857, 1.442695
    %v1860 = vpow.pop %v1859
    %v1861 = vmul.f32 %v1858, 1.442695
    %v1862 = vpow.pop %v1861
    %v1863 = vadd.f32 %v1860, 1.0
    %v1864 = vadd.f32 %v1862, 1.0
    %v1865 = vrcp.pop %v1863
    %v1866 = vmul.f32 1.0, %v1865
    %v1867 = vrcp.pop %v1864
    %v1868 = vmul.f32 1.0, %v1867
    %v1869 = vtanh.pop %v1855
    %v1870 = vtanh.pop %v1856
    %v1871 = vmul.f32 %v1866, %v1771
    %v1872 = vmul.f32 %v1868, %v1772
    %1875 = vrot.lane.b32.xlu0 %v1869, 32
    %v1876 = vpop.permute.xlu0 %1875
    %1877 = vrot.lane.b32.xlu0 %v1870, 32
    %v1878 = vpop.permute.xlu0 %1877
    %v1881 = vmul.f32 %v1866, %v1876
    %v1882 = vmul.f32 %v1868, %v1878
    %1885 = vrot.lane.b32.xlu0 %v1881, 32
    %v1886 = vpop.permute.xlu0 %1885
    %1887 = vrot.lane.b32.xlu0 %v1882, 32
    %v1888 = vpop.permute.xlu0 %1887
    %v1891 = vadd.f32 %v1871, %v1886
    %v1892 = vadd.f32 %v1872, %v1888
    %v1893 = vtanh.pop %v1891
    %v1894 = vtanh.pop %v1892
    %1897 = vrot.lane.b32.xlu0 %v1893, 32
    %v1898 = vpop.permute.xlu0 %1897
    %1899 = vrot.lane.b32.xlu0 %v1894, 32
    %v1900 = vpop.permute.xlu0 %1899
    %v1903 = vmul.f32 %v1866, %v1898
    %v1904 = vmul.f32 %v1868, %v1900
    %1907 = vrot.lane.b32.xlu0 %v1903, 64
    %v1908 = vpop.permute.xlu0 %1907
    %1909 = vrot.lane.b32.xlu0 %v1904, 64
    %v1910 = vpop.permute.xlu0 %1909
    %1913 = vst.msk [vmem:[#allocation2 + $0x5] sm:$0x1] %vm277, %v1908
    %1914 = vst.msk [vmem:[#allocation2 + $0xd] sm:$0x1] %vm277, %v1910
    %v1915 = vld [vmem:[#allocation3 + $0x6] sm:$0x1]
    %v1916 = vld [vmem:[#allocation3 + $0xe] sm:$0x1]
    %v1917 = vpack.c.bf16 %v1903, %v1903
    %v1918 = vpack.c.bf16 %v1904, %v1904
    %v1921 = vunpack.c.l.b16 %v1917
    %v1922 = vunpack.c.l.b16 %v1918
    %v1923 = vrot.slane %v1922, 7
    %v1924 = vsel %vm289, %v1923, %v1921
    %v1925 = vpack.c.b16 %v1924, %v1924
    %1926 = vrot.lane.b32.xlu0 %v1925, 64
    %v1927 = vpop.permute.xlu0 %1926
    %v1929 = vsel %vm171, %v1927, 0
    %1931 = vmatprep.subr.bf16.mxu0 0
    %1932 = vmatpush1.bf16.msra.mxu0 0
    %1933 = vmatprep.subr.bf16.mxu0 0
    %1934 = vmatpush1.bf16.msra.mxu0 0
    %1935 = vmatprep.subr.bf16.mxu0 0
    %1936 = vmatpush1.bf16.msra.mxu0 0
    %1937 = vmatprep.subr.bf16.mxu0 0
    %1938 = vmatpush1.bf16.msra.mxu0 0
    %1939 = vmatprep.subr.bf16.mxu0 0
    %1940 = vmatpush1.bf16.msra.mxu0 0
    %1941 = vmatprep.subr.bf16.mxu0 0
    %1942 = vmatpush1.bf16.msra.mxu0 0
    %1943 = vmatprep.subr.bf16.mxu0 0
    %1944 = vmatpush1.bf16.msra.mxu0 %v1208
    %1945 = vmatprep.subr.bf16.mxu0 0
    %1946 = vmatpush1.bf16.msra.mxu0 %v1207
    %1947 = vmatprep.subr.bf16.mxu0 0
    %1948 = vmatpush2.bf16.msra.mxu0 0
    %1949 = vmatprep.subr.bf16.mxu0 0
    %1950 = vmatpush2.bf16.msra.mxu0 0
    %1951 = vmatprep.subr.bf16.mxu0 0
    %1952 = vmatpush2.bf16.msra.mxu0 0
    %1953 = vmatprep.subr.bf16.mxu0 0
    %1954 = vmatpush2.bf16.msra.mxu0 0
    %1955 = vmatprep.subr.bf16.mxu0 0
    %1956 = vmatpush2.bf16.msra.mxu0 0
    %1957 = vmatprep.subr.bf16.mxu0 0
    %1958 = vmatpush2.bf16.msra.mxu0 0
    %1959 = vmatprep.subr.bf16.mxu0 0
    %1960 = vmatpush2.bf16.msra.mxu0 0
    %1961 = vmatprep.subr.bf16.mxu0 0
    %1962 = vmatpush2.bf16.msra.mxu0 0
    %1963 = vmatprep.mubr.bf16.mxu0 0
    %1964 = vmatmul.mubr.bf16.gmra.mxu0 %v1929
    %v1965 = vpop.f32.mrf.mxu0
    %v1966 = vadd.f32 0.0, %v1965
    %v1967 = vpop.f32.mrf.mxu0
    %v1968 = vpop.f32.mrf.mxu0
    %v1969 = vpop.f32.mrf.mxu0
    %1970 = vdwg.mxu0
    %v1972 = vrot.slane %v1966, 1
    %v1975 = vadd.f32 %v1915, %v1966
    %v1976 = vadd.f32 %v1916, %v1972
    %v1977 = vxor.u32 %v1975, 2147483648
    %v1978 = vxor.u32 %v1976, 2147483648
    %v1979 = vmul.f32 %v1977, 1.442695
    %v1980 = vpow.pop %v1979
    %v1981 = vmul.f32 %v1978, 1.442695
    %v1982 = vpow.pop %v1981
    %v1983 = vadd.f32 %v1980, 1.0
    %v1984 = vadd.f32 %v1982, 1.0
    %v1985 = vrcp.pop %v1983
    %v1986 = vmul.f32 1.0, %v1985
    %v1987 = vrcp.pop %v1984
    %v1988 = vmul.f32 1.0, %v1987
    %v1989 = vtanh.pop %v1975
    %v1990 = vtanh.pop %v1976
    %v1991 = vmul.f32 %v1986, %v1891
    %v1992 = vmul.f32 %v1988, %v1892
    %1995 = vrot.lane.b32.xlu0 %v1989, 32
    %v1996 = vpop.permute.xlu0 %1995
    %1997 = vrot.lane.b32.xlu0 %v1990, 32
    %v1998 = vpop.permute.xlu0 %1997
    %v2001 = vmul.f32 %v1986, %v1996
    %v2002 = vmul.f32 %v1988, %v1998
    %2005 = vrot.lane.b32.xlu0 %v2001, 32
    %v2006 = vpop.permute.xlu0 %2005
    %2007 = vrot.lane.b32.xlu0 %v2002, 32
    %v2008 = vpop.permute.xlu0 %2007
    %v2011 = vadd.f32 %v1991, %v2006
    %v2012 = vadd.f32 %v1992, %v2008
    %v2013 = vtanh.pop %v2011
    %v2014 = vtanh.pop %v2012
    %2017 = vrot.lane.b32.xlu0 %v2013, 32
    %v2018 = vpop.permute.xlu0 %2017
    %2019 = vrot.lane.b32.xlu0 %v2014, 32
    %v2020 = vpop.permute.xlu0 %2019
    %v2023 = vmul.f32 %v1986, %v2018
    %v2024 = vmul.f32 %v1988, %v2020
    %2027 = vrot.lane.b32.xlu0 %v2023, 64
    %v2028 = vpop.permute.xlu0 %2027
    %2029 = vrot.lane.b32.xlu0 %v2024, 64
    %v2030 = vpop.permute.xlu0 %2029
    %2033 = vst.msk [vmem:[#allocation2 + $0x6] sm:$0x1] %vm277, %v2028
    %2034 = vst.msk [vmem:[#allocation2 + $0xe] sm:$0x1] %vm277, %v2030
    %v2035 = vld [vmem:[#allocation3 + $0x7] sm:$0x1]
    %v2036 = vld [vmem:[#allocation3 + $0xf] sm:$0x1]
    %v2037 = vpack.c.bf16 %v2023, %v2023
    %v2038 = vpack.c.bf16 %v2024, %v2024
    %v2041 = vunpack.c.l.b16 %v2037
    %v2042 = vunpack.c.l.b16 %v2038
    %v2043 = vrot.slane %v2042, 7
    %v2044 = vsel %vm289, %v2043, %v2041
    %v2045 = vpack.c.b16 %v2044, %v2044
    %2046 = vrot.lane.b32.xlu0 %v2045, 64
    %v2047 = vpop.permute.xlu0 %2046
    %v2049 = vsel %vm171, %v2047, 0
    %2051 = vmatprep.subr.bf16.mxu0 0
    %2052 = vmatpush1.bf16.msra.mxu0 0
    %2053 = vmatprep.subr.bf16.mxu0 0
    %2054 = vmatpush1.bf16.msra.mxu0 0
    %2055 = vmatprep.subr.bf16.mxu0 0
    %2056 = vmatpush1.bf16.msra.mxu0 0
    %2057 = vmatprep.subr.bf16.mxu0 0
    %2058 = vmatpush1.bf16.msra.mxu0 0
    %2059 = vmatprep.subr.bf16.mxu0 0
    %2060 = vmatpush1.bf16.msra.mxu0 0
    %2061 = vmatprep.subr.bf16.mxu0 0
    %2062 = vmatpush1.bf16.msra.mxu0 0
    %2063 = vmatprep.subr.bf16.mxu0 0
    %2064 = vmatpush1.bf16.msra.mxu0 %v1208
    %2065 = vmatprep.subr.bf16.mxu0 0
    %2066 = vmatpush1.bf16.msra.mxu0 %v1207
    %2067 = vmatprep.subr.bf16.mxu0 0
    %2068 = vmatpush2.bf16.msra.mxu0 0
    %2069 = vmatprep.subr.bf16.mxu0 0
    %2070 = vmatpush2.bf16.msra.mxu0 0
    %2071 = vmatprep.subr.bf16.mxu0 0
    %2072 = vmatpush2.bf16.msra.mxu0 0
    %2073 = vmatprep.subr.bf16.mxu0 0
    %2074 = vmatpush2.bf16.msra.mxu0 0
    %2075 = vmatprep.subr.bf16.mxu0 0
    %2076 = vmatpush2.bf16.msra.mxu0 0
    %2077 = vmatprep.subr.bf16.mxu0 0
    %2078 = vmatpush2.bf16.msra.mxu0 0
    %2079 = vmatprep.subr.bf16.mxu0 0
    %2080 = vmatpush2.bf16.msra.mxu0 0
    %2081 = vmatprep.subr.bf16.mxu0 0
    %2082 = vmatpush2.bf16.msra.mxu0 0
    %2083 = vmatprep.mubr.bf16.mxu0 0
    %2084 = vmatmul.mubr.bf16.gmra.mxu0 %v2049
    %v2085 = vpop.f32.mrf.mxu0
    %v2086 = vadd.f32 0.0, %v2085
    %v2087 = vpop.f32.mrf.mxu0
    %v2088 = vpop.f32.mrf.mxu0
    %v2089 = vpop.f32.mrf.mxu0
    %2090 = vdwg.mxu0
    %v2092 = vrot.slane %v2086, 1
    %v2095 = vadd.f32 %v2035, %v2086
    %v2096 = vadd.f32 %v2036, %v2092
    %v2097 = vxor.u32 %v2095, 2147483648
    %v2098 = vxor.u32 %v2096, 2147483648
    %v2099 = vmul.f32 %v2097, 1.442695
    %v2100 = vpow.pop %v2099
    %v2101 = vmul.f32 %v2098, 1.442695
    %v2102 = vpow.pop %v2101
    %v2103 = vadd.f32 %v2100, 1.0
    %v2104 = vadd.f32 %v2102, 1.0
    %v2105 = vrcp.pop %v2103
    %v2106 = vmul.f32 1.0, %v2105
    %v2107 = vrcp.pop %v2104
    %v2108 = vmul.f32 1.0, %v2107
    %v2109 = vtanh.pop %v2095
    %v2110 = vtanh.pop %v2096
    %v2111 = vmul.f32 %v2106, %v2011
    %v2112 = vmul.f32 %v2108, %v2012
    %2115 = vrot.lane.b32.xlu0 %v2109, 32
    %v2116 = vpop.permute.xlu0 %2115
    %2117 = vrot.lane.b32.xlu0 %v2110, 32
    %v2118 = vpop.permute.xlu0 %2117
    %v2121 = vmul.f32 %v2106, %v2116
    %v2122 = vmul.f32 %v2108, %v2118
    %2125 = vrot.lane.b32.xlu0 %v2121, 32
    %v2126 = vpop.permute.xlu0 %2125
    %2127 = vrot.lane.b32.xlu0 %v2122, 32
    %v2128 = vpop.permute.xlu0 %2127
    %v2131 = vadd.f32 %v2111, %v2126
    %v2132 = vadd.f32 %v2112, %v2128
    %v2133 = vtanh.pop %v2131
    %v2134 = vtanh.pop %v2132
    %2137 = vrot.lane.b32.xlu0 %v2133, 32
    %v2138 = vpop.permute.xlu0 %2137
    %2139 = vrot.lane.b32.xlu0 %v2134, 32
    %v2140 = vpop.permute.xlu0 %2139
    %v2143 = vmul.f32 %v2106, %v2138
    %v2144 = vmul.f32 %v2108, %v2140
    %2147 = vrot.lane.b32.xlu0 %v2143, 64
    %v2148 = vpop.permute.xlu0 %2147
    %2149 = vrot.lane.b32.xlu0 %v2144, 64
    %v2150 = vpop.permute.xlu0 %2149
    %2153 = vst.msk [vmem:[#allocation2 + $0x7] sm:$0x1] %vm277, %v2148
    %2154 = vst.msk [vmem:[#allocation2 + $0xf] sm:$0x1] %vm277, %v2150
    %v2155 = vld [vmem:[%s7] sm:$0xf]
    %v2156 = vld [vmem:[%s7 + $0x4] sm:$0xf]
    %v2157 = vld [vmem:[%s7 + $0x8] sm:$0xf]
    %v2158 = vld [vmem:[%s7 + $0xc] sm:$0xf]
    %v2159 = vld [vmem:[%s8] sm:$0x1]
    %v2160 = vld [vmem:[#allocation2] sm:$0xff]
    %v2161 = vld [vmem:[#allocation2 + $0x8] sm:$0xff]
    %v2162 = vpack.c.bf16 %v2161, %v2160
    %v2164 = vlaneseq
    %v2165 = vshrl.u32 %v2164, 7
    %v2166 = vsub.s32 0, %v2165
    %v2167 = vrot.slane %v2159, %v2166
    %v2173 = vunpack.c.l.b16 %v2155
    %v2174 = vunpack.c.l.b16 %v2156
    %v2175 = vunpack.c.l.b16 %v2157
    %v2176 = vunpack.c.l.b16 %v2158
    %v2177 = vpack.c.b16 %v2174, %v2173
    %v2178 = vpack.c.b16 %v2176, %v2175
    %v2182 = vsel %vm171, %v2162, 0
    %2184 = vmatprep.subr.bf16.mxu0 0
    %2185 = vmatpush1.bf16.msra.mxu0 0
    %2186 = vmatprep.subr.bf16.mxu0 0
    %2187 = vmatpush1.bf16.msra.mxu0 0
    %2188 = vmatprep.subr.bf16.mxu0 0
    %2189 = vmatpush1.bf16.msra.mxu0 0
    %2190 = vmatprep.subr.bf16.mxu0 0
    %2191 = vmatpush1.bf16.msra.mxu0 0
    %2192 = vmatprep.subr.bf16.mxu0 0
    %2193 = vmatpush1.bf16.msra.mxu0 0
    %2194 = vmatprep.subr.bf16.mxu0 0
    %2195 = vmatpush1.bf16.msra.mxu0 0
    %2196 = vmatprep.subr.bf16.mxu0 0
    %2197 = vmatpush1.bf16.msra.mxu0 %v2178
    %2198 = vmatprep.subr.bf16.mxu0 0
    %2199 = vmatpush1.bf16.msra.mxu0 %v2177
    %2200 = vmatprep.subr.bf16.mxu0 0
    %2201 = vmatpush2.bf16.msra.mxu0 0
    %2202 = vmatprep.subr.bf16.mxu0 0
    %2203 = vmatpush2.bf16.msra.mxu0 0
    %2204 = vmatprep.subr.bf16.mxu0 0
    %2205 = vmatpush2.bf16.msra.mxu0 0
    %2206 = vmatprep.subr.bf16.mxu0 0
    %2207 = vmatpush2.bf16.msra.mxu0 0
    %2208 = vmatprep.subr.bf16.mxu0 0
    %2209 = vmatpush2.bf16.msra.mxu0 0
    %2210 = vmatprep.subr.bf16.mxu0 0
    %2211 = vmatpush2.bf16.msra.mxu0 0
    %2212 = vmatprep.subr.bf16.mxu0 0
    %2213 = vmatpush2.bf16.msra.mxu0 0
    %2214 = vmatprep.subr.bf16.mxu0 0
    %2215 = vmatpush2.bf16.msra.mxu0 0
    %2216 = vmatprep.mubr.bf16.mxu0 0
    %2217 = vmatmul.mubr.bf16.gmra.mxu0 %v2182
    %v2218 = vpop.f32.mrf.mxu0
    %v2219 = vadd.f32 %v2167, %v2218
    %v2220 = vpop.f32.mrf.mxu0
    %v2221 = vpop.f32.mrf.mxu0
    %v2222 = vadd.f32 %v2167, %v2221
    %v2223 = vpop.f32.mrf.mxu0
    %2224 = vdwg.mxu0
    %v2225 = vxor.u32 %v2219, 2147483648
    %v2226 = vxor.u32 %v2222, 2147483648
    %v2227 = vmul.f32 %v2225, 1.442695
    %v2228 = vpow.pop %v2227
    %v2229 = vmul.f32 %v2226, 1.442695
    %v2230 = vpow.pop %v2229
    %v2231 = vadd.f32 %v2228, 1.0
    %v2232 = vadd.f32 %v2230, 1.0
    %v2233 = vrcp.pop %v2231
    %v2234 = vmul.f32 1.0, %v2233
    %v2235 = vrcp.pop %v2232
    %v2236 = vmul.f32 1.0, %v2235
    %vm2237 = vcmask 31744
    %2238 = vst.msk [vmem:[%s9] sm:$0xff] %vm2237, %v2234
    %2239 = vst.msk [vmem:[%s9 + $0x8] sm:$0xff] %vm2237, %v2236
    // Predicated region
    $region54: #{lstm_model_forward.1} parent=1 // pred_check
      _
    $region55: #{lstm_model_forward.1} parent=1 // pred_check_branch
      %2241 = sbr.rel (0) target = $region57
    $region56: #{lstm_model_forward.1} parent=1 // pred_region
      _
    $region57: #{lstm_model_forward.1} parent=1 // pred_fallthru
      _
    // Predicated region
    $region58: #{lstm_model_forward.1} parent=1 // pred_check
      _
    $region59: #{lstm_model_forward.1} parent=1 // pred_check_branch
      %2243 = sbr.rel (0) target = $region61
    $region60: #{lstm_model_forward.1} parent=1 // pred_region
      _
    $region61: #{lstm_model_forward.1} parent=1 // pred_fallthru
      _
    %2244 = vsyncpa [#allocation5], 1
    %2245 = vsyncpa [#allocation7], 1
    %2246 = vsyncpa [#allocation10], 1

</llo_original>
